<compile_context>
chip_gen: v7x
topology: tpu7x:2x2x1
jax: 0.10.0
libtpu: 0.0.40
codegen_flags: <defaults>
</compile_context>

<pallas_src>
import math
import jax
import jax.numpy as jnp
from jax import lax
from jax.experimental import pallas as pl
from jax.experimental.pallas import tpu as pltpu

# Small config consistent with the module (hidden divisible by heads, intermediate = 2*hidden)
B, S, H = 2, 8, 32
BS = B * S
NUM_HEADS = 4
HEAD_DIM = H // NUM_HEADS
INTER = 2 * H                     # 64
EPS = 1e-12                       # config.layer_norm_eps default (BERT-style), per the spec config

# ---- packed small-parameter slab layout (rows of width INTER = 64) ----
R_LN1G, R_LN1B, R_LN2G, R_LN2B = 0, 1, 2, 3
R_BQ, R_BK, R_BV, R_BO = 4, 5, 6, 7
R_B2, R_WG, R_B1, R_BG = 8, 9, 10, 11
R_MASK = 16                       # sublane-aligned start of the (BS, BS) additive batch-block mask
N_SMALL = R_MASK + BS             # 32 rows

# ---- packed weight slab layout: [wq*scale ; wk ; wv ; wo ; w2] -> (4*H + INTER, H) ----
W_Q, W_K, W_V, W_O, W_2 = 0, H, 2 * H, 3 * H, 4 * H
N_WSTACK = 4 * H + INTER          # 192


def _layer_kernel(x_ref, ctx_ref, wstack_ref, w1_ref, small_ref, o_ref):
    x = x_ref[...]                        # (BS, H) f32 — both batch elements in one slab
    small = small_ref[...]                # (N_SMALL, INTER) packed LN/bias/gate/mask params

    def layer_norm(v, g, b):
        mu = jnp.mean(v, axis=-1, keepdims=True)
        d = v - mu
        var = jnp.mean(d * d, axis=-1, keepdims=True)
        return d * lax.rsqrt(var + EPS) * g + b

    # ---- LN1 + multi-head self-attention (no attention_mask; eval => no dropout) ----
    h = layer_norm(x, small[R_LN1G:R_LN1G + 1, :H], small[R_LN1B:R_LN1B + 1, :H])

    # 1/sqrt(head_dim) is already folded into wq / bq (pack_params), no per-score scaling.
    q = jnp.dot(h, wstack_ref[pl.ds(W_Q, H), :], preferred_element_type=jnp.float32) + small[R_BQ:R_BQ + 1, :H]
    k = jnp.dot(h, wstack_ref[pl.ds(W_K, H), :], preferred_element_type=jnp.float32) + small[R_BK:R_BK + 1, :H]
    v = jnp.dot(h, wstack_ref[pl.ds(W_V, H), :], preferred_element_type=jnp.float32) + small[R_BV:R_BV + 1, :H]

    # Additive block-diagonal mask (0 inside a batch element, -1e30 across batches) lets each
    # head's score matmul cover all BS rows in a single dot instead of per-batch tiny dots.
    block_mask = small[R_MASK:R_MASK + BS, :BS]          # (BS, BS)

    attn = jnp.zeros((BS, H), jnp.float32)
    for hh in range(NUM_HEADS):                          # static unroll, NUM_HEADS = 4
        lo = hh * HEAD_DIM
        qh = q[:, lo:lo + HEAD_DIM]
        kh = k[:, lo:lo + HEAD_DIM]
        vh = v[:, lo:lo + HEAD_DIM]

        s = jnp.dot(qh, kh.T, preferred_element_type=jnp.float32) + block_mask   # (BS, BS)
        m = jnp.max(s, axis=-1, keepdims=True)
        p = jnp.exp(s - m)
        den = jnp.sum(p, axis=-1, keepdims=True)
        inv = pl.reciprocal(den, approx=True)            # EUP estimate ...
        inv = inv * (2.0 - den * inv)                    # ... + one Newton step -> f32 accurate
        p = p * inv

        ch = jnp.dot(p, vh, preferred_element_type=jnp.float32)                  # (BS, HEAD_DIM)
        # Accumulate each head through its row-slice of W_o -> no concatenate needed.
        wo_h = wstack_ref[pl.ds(W_O + lo, HEAD_DIM), :]
        attn = attn + jnp.dot(ch, wo_h, preferred_element_type=jnp.float32)

    x = x + attn + small[R_BO:R_BO + 1, :H]              # residual 1 (+ output-proj bias)

    # ---- LN2 + feed-forward: Linear -> GELU(exact erf) -> Linear ----
    h2 = layer_norm(x, small[R_LN2G:R_LN2G + 1, :H], small[R_LN2B:R_LN2B + 1, :H])
    f = jnp.dot(h2, w1_ref[...], preferred_element_type=jnp.float32) + small[R_B1:R_B1 + 1, :]
    f = 0.5 * f * (1.0 + lax.erf(f * jnp.float32(1.0 / math.sqrt(2.0))))   # exact GELU (torch default)
    f = jnp.dot(f, wstack_ref[pl.ds(W_2, INTER), :], preferred_element_type=jnp.float32) + small[R_B2:R_B2 + 1, :H]

    x = x + f                                            # residual 2

    # ---- theological context gate: sigmoid(Linear(H -> 1)), gated mix ----
    g_logit = jnp.sum(x * small[R_WG:R_WG + 1, :H], axis=-1, keepdims=True) + small[R_BG:R_BG + 1, 0:1]
    gate = jax.nn.sigmoid(g_logit)
    ctx = ctx_ref[...]
    # NOTE: last-dim-32 store is a masked vst; a (4,128) lane-dense layout would need an
    # in-kernel relayout whose cost ~= the saving at this tiny size, so we keep natural layout.
    o_ref[...] = (x * (1.0 - gate) + ctx * gate).astype(o_ref.dtype)

    # TODO(synk): attention_mask support (additive mask on scores) not wired; caller passes None.


def pack_params(p):
    """One-time parameter prep: fold attention scale into wq/bq, stack the HxH attention
    weights + w2 into one slab, and pack every small vector/scalar (plus the batch-block
    attention mask) into a single (N_SMALL, INTER) slab -> only 5 kernel inputs per call."""
    scale = jnp.float32(1.0 / math.sqrt(HEAD_DIM))
    wstack = jnp.concatenate(
        [p["wq"] * scale, p["wk"], p["wv"], p["wo"], p["w2"]], axis=0).astype(jnp.float32)  # (192, H)

    def row(a):
        a = a.astype(jnp.float32)
        return jnp.pad(a, ((0, 0), (0, INTER - a.shape[1])))

    bid = jnp.arange(BS, dtype=jnp.int32) // S
    mask = jnp.where(bid[:, None] == bid[None, :], 0.0, -1e30).astype(jnp.float32)  # (BS, BS)

    small = jnp.concatenate(
        [row(p["ln1g"]), row(p["ln1b"]), row(p["ln2g"]), row(p["ln2b"]),
         row(p["bq"] * scale), row(p["bk"]), row(p["bv"]), row(p["bo"]),
         row(p["b2"]), row(p["wg"]), p["b1"].astype(jnp.float32), row(p["bg"]),
         jnp.zeros((R_MASK - 12, INTER), jnp.float32),
         row(mask)],
        axis=0)                                                                      # (N_SMALL, INTER)
    return wstack, p["w1"].astype(jnp.float32), small


def _full_spec(shape):
    nd = len(shape)
    return pl.BlockSpec(shape, lambda i, _nd=nd: (0,) * _nd)


def biblical_transformer_layer(x, theo_ctx, packed):
    """x, theo_ctx: [B, S, H] float32. packed = pack_params(params). Returns [B, S, H]."""
    wstack, w1, small = packed
    xf = x.reshape(BS, H)
    cf = theo_ctx.reshape(BS, H)

    flops = (3 * 2 * BS * H * H                          # QKV projections
             + 2 * NUM_HEADS * 2 * BS * BS * HEAD_DIM    # scores + PV
             + NUM_HEADS * 2 * BS * HEAD_DIM * H         # output projection
             + 2 * 2 * BS * H * INTER                    # feed-forward
             + 24 * BS * H)                              # LN / residuals / gate (rough)
    transcendentals = NUM_HEADS * BS * (BS + 1) + BS * INTER + 3 * BS
    bytes_accessed = 4 * (3 * BS * H + wstack.size + w1.size + small.size)

    out = pl.pallas_call(
        _layer_kernel,
        out_shape=jax.ShapeDtypeStruct((BS, H), jnp.float32),
        grid_spec=pltpu.PrefetchScalarGridSpec(
            num_scalar_prefetch=0,
            grid=(1,),                                   # single step: whole problem per invocation
            in_specs=[_full_spec((BS, H)),               # hidden_states (flattened batch*seq)
                      _full_spec((BS, H)),               # theological_context
                      _full_spec((N_WSTACK, H)),         # stacked wq*scale|wk|wv|wo|w2
                      _full_spec((H, INTER)),            # w1
                      _full_spec((N_SMALL, INTER))],     # packed small params + batch mask
            out_specs=_full_spec((BS, H)),
        ),
        compiler_params=pltpu.CompilerParams(dimension_semantics=("arbitrary",)),
        cost_estimate=pl.CostEstimate(flops=flops, transcendentals=transcendentals,
                                      bytes_accessed=bytes_accessed),
    )(xf, cf, wstack, w1, small)
    return out.reshape(B, S, H)


def make_params(key):
    ks = jax.random.split(key, 12)
    scale = 0.05
    p = {
        # LayerNorms (torch init: weight=1, bias=0)
        "ln1g": jnp.ones((1, H), jnp.float32), "ln1b": jnp.zeros((1, H), jnp.float32),
        "ln2g": jnp.ones((1, H), jnp.float32), "ln2b": jnp.zeros((1, H), jnp.float32),
        # attention projections, stored [in, out]
        "wq": scale * jax.random.normal(ks[0], (H, H), jnp.float32),
        "bq": scale * jax.random.normal(ks[1], (1, H), jnp.float32),
        "wk": scale * jax.random.normal(ks[2], (H, H), jnp.float32),
        "bk": scale * jax.random.normal(ks[3], (1, H), jnp.float32),
        "wv": scale * jax.random.normal(ks[4], (H, H), jnp.float32),
        "bv": scale * jax.random.normal(ks[5], (1, H), jnp.float32),
        "wo": scale * jax.random.normal(ks[6], (H, H), jnp.float32),
        "bo": scale * jax.random.normal(ks[7], (1, H), jnp.float32),
        # feed-forward, stored [in, out]
        "w1": scale * jax.random.normal(ks[8], (H, INTER), jnp.float32),
        "b1": scale * jax.random.normal(ks[9], (1, INTER), jnp.float32),
        "w2": scale * jax.random.normal(ks[10], (INTER, H), jnp.float32),
        "b2": scale * jax.random.normal(ks[11], (1, H), jnp.float32),
        # theological context gate (Linear(H -> 1)) as a (1, H) row + scalar bias
        "wg": scale * jax.random.normal(jax.random.fold_in(key, 100), (1, H), jnp.float32),
        "bg": scale * jax.random.normal(jax.random.fold_in(key, 101), (1, 1), jnp.float32),
    }
    return p


def ref_forward(x, ctx, p):
    """Pure-JAX reference matching the PyTorch forward (eval mode, no mask)."""
    def ln(v, g, b):
        mu = v.mean(-1, keepdims=True)
        var = ((v - mu) ** 2).mean(-1, keepdims=True)
        return (v - mu) / jnp.sqrt(var + EPS) * g + b

    h = ln(x, p["ln1g"], p["ln1b"])
    q = h @ p["wq"] + p["bq"]
    k = h @ p["wk"] + p["bk"]
    v = h @ p["wv"] + p["bv"]
    q = q.reshape(B, S, NUM_HEADS, HEAD_DIM).transpose(0, 2, 1, 3)
    k = k.reshape(B, S, NUM_HEADS, HEAD_DIM).transpose(0, 2, 1, 3)
    v = v.reshape(B, S, NUM_HEADS, HEAD_DIM).transpose(0, 2, 1, 3)
    s = jnp.einsum("bhqd,bhkd->bhqk", q, k) / math.sqrt(HEAD_DIM)
    pw = jax.nn.softmax(s, axis=-1)
    a = jnp.einsum("bhqk,bhkd->bhqd", pw, v).transpose(0, 2, 1, 3).reshape(B, S, H)
    a = a @ p["wo"] + p["bo"]
    x = x + a
    h = ln(x, p["ln2g"], p["ln2b"])
    f = h @ p["w1"] + p["b1"]
    f = 0.5 * f * (1.0 + lax.erf(f / math.sqrt(2.0)))
    f = f @ p["w2"] + p["b2"]
    x = x + f
    gate = jax.nn.sigmoid(jnp.sum(x * p["wg"], axis=-1, keepdims=True) + p["bg"][0, 0])
    return x * (1.0 - gate) + ctx * gate


if __name__ == "__main__":
    key = jax.random.PRNGKey(0)
    k_x, k_c, k_p = jax.random.split(key, 3)
    x = jax.random.normal(k_x, (B, S, H), jnp.float32)
    theo_ctx = jax.random.normal(k_c, (B, S, H), jnp.float32)
    params = make_params(k_p)
    packed = jax.tree_util.tree_map(jax.block_until_ready, pack_params(params))  # one-time prep

    out = biblical_transformer_layer(x, theo_ctx, packed)
    out = jax.block_until_ready(out)

    expected = ref_forward(x, theo_ctx, params)
    assert out.shape == (B, S, H)
    assert jnp.allclose(out, expected, rtol=1e-4, atol=1e-4), (
        f"max abs err {jnp.max(jnp.abs(out - expected))}")

    print("KERNEL_OK")
</pallas_src>

<mosaic_0001>
module attributes {stable_mosaic.version = 11 : i64} {
  func.func @_layer_kernel(%arg0: i32, %arg1: memref<16x32xf32, #tpu.memory_space<vmem>>, %arg2: memref<16x32xf32, #tpu.memory_space<vmem>>, %arg3: memref<192x32xf32, #tpu.memory_space<vmem>>, %arg4: memref<32x64xf32, #tpu.memory_space<vmem>>, %arg5: memref<32x64xf32, #tpu.memory_space<vmem>>, %arg6: memref<16x32xf32, #tpu.memory_space<vmem>>) attributes {dimension_semantics = [#tpu.dimension_semantics<arbitrary>], iteration_bounds = array<i64: 1>, scalar_prefetch = 0 : i64, scratch_operands = 0 : i64, tpu.core_type = #tpu.core_type<tc>, window_params = [{pipeline_mode = #tpu.pipeline_mode<synchronous>, transform_indices = @transform_0, window_bounds = array<i64: 16, 32>}, {pipeline_mode = #tpu.pipeline_mode<synchronous>, transform_indices = @transform_1, window_bounds = array<i64: 16, 32>}, {pipeline_mode = #tpu.pipeline_mode<synchronous>, transform_indices = @transform_2, window_bounds = array<i64: 192, 32>}, {pipeline_mode = #tpu.pipeline_mode<synchronous>, transform_indices = @transform_3, window_bounds = array<i64: 32, 64>}, {pipeline_mode = #tpu.pipeline_mode<synchronous>, transform_indices = @transform_4, window_bounds = array<i64: 32, 64>}, {pipeline_mode = #tpu.pipeline_mode<synchronous>, transform_indices = @transform_5, window_bounds = array<i64: 16, 32>}]} {
    %c0 = arith.constant 0 : index
    %c0_0 = arith.constant 0 : index
    %0 = vector.load %arg1[%c0, %c0_0] : memref<16x32xf32, #tpu.memory_space<vmem>>, vector<16x32xf32>
    %c0_1 = arith.constant 0 : index
    %c0_2 = arith.constant 0 : index
    %1 = vector.load %arg5[%c0_1, %c0_2] : memref<32x64xf32, #tpu.memory_space<vmem>>, vector<32x64xf32>
    %2 = vector.extract_strided_slice %1 {offsets = [0, 0], sizes = [1, 32], strides = [1, 1]} : vector<32x64xf32> to vector<1x32xf32>
    %3 = vector.extract_strided_slice %1 {offsets = [1, 0], sizes = [1, 32], strides = [1, 1]} : vector<32x64xf32> to vector<1x32xf32>
    %cst = arith.constant dense<0.000000e+00> : vector<16xf32>
    %4 = vector.multi_reduction <add>, %0, %cst [1] : vector<16x32xf32> to vector<16xf32>
    %5 = vector.shape_cast %4 : vector<16xf32> to vector<16x1xf32>
    %cst_3 = arith.constant 3.200000e+01 : f32
    %6 = vector.broadcast %cst_3 : f32 to vector<16x1xf32>
    %7 = arith.divf %5, %6 : vector<16x1xf32>
    %8 = vector.broadcast %7 : vector<16x1xf32> to vector<16x32xf32>
    %9 = arith.subf %0, %8 : vector<16x32xf32>
    %10 = arith.mulf %9, %9 : vector<16x32xf32>
    %cst_4 = arith.constant dense<0.000000e+00> : vector<16xf32>
    %11 = vector.multi_reduction <add>, %10, %cst_4 [1] : vector<16x32xf32> to vector<16xf32>
    %12 = vector.shape_cast %11 : vector<16xf32> to vector<16x1xf32>
    %cst_5 = arith.constant 3.200000e+01 : f32
    %13 = vector.broadcast %cst_5 : f32 to vector<16x1xf32>
    %14 = arith.divf %12, %13 : vector<16x1xf32>
    %cst_6 = arith.constant 9.99999996E-13 : f32
    %15 = vector.broadcast %cst_6 : f32 to vector<16x1xf32>
    %16 = arith.addf %14, %15 : vector<16x1xf32>
    %17 = math.rsqrt %16 : vector<16x1xf32>
    %18 = vector.broadcast %17 : vector<16x1xf32> to vector<16x32xf32>
    %19 = arith.mulf %9, %18 : vector<16x32xf32>
    %20 = vector.broadcast %2 : vector<1x32xf32> to vector<16x32xf32>
    %21 = arith.mulf %19, %20 : vector<16x32xf32>
    %22 = vector.broadcast %3 : vector<1x32xf32> to vector<16x32xf32>
    %23 = arith.addf %21, %22 : vector<16x32xf32>
    %c0_7 = arith.constant 0 : index
    %c0_8 = arith.constant 0 : index
    %24 = vector.load %arg3[%c0_7, %c0_8] : memref<192x32xf32, #tpu.memory_space<vmem>>, vector<32x32xf32>
    %cst_9 = arith.constant dense<0.000000e+00> : vector<16x32xf32>
    %25 = tpu.matmul %23, %24, %cst_9 {dimension_numbers = #tpu.dot_dimension_numbers<[1], [0], [0], [1], [0, 0, 1, 1], [], []>} : vector<16x32xf32>, vector<32x32xf32>, vector<16x32xf32> -> vector<16x32xf32>
    %26 = vector.extract_strided_slice %1 {offsets = [4, 0], sizes = [1, 32], strides = [1, 1]} : vector<32x64xf32> to vector<1x32xf32>
    %27 = vector.broadcast %26 : vector<1x32xf32> to vector<16x32xf32>
    %28 = arith.addf %25, %27 : vector<16x32xf32>
    %c32 = arith.constant 32 : index
    %c0_10 = arith.constant 0 : index
    %29 = vector.load %arg3[%c32, %c0_10] : memref<192x32xf32, #tpu.memory_space<vmem>>, vector<32x32xf32>
    %cst_11 = arith.constant dense<0.000000e+00> : vector<16x32xf32>
    %30 = tpu.matmul %23, %29, %cst_11 {dimension_numbers = #tpu.dot_dimension_numbers<[1], [0], [0], [1], [0, 0, 1, 1], [], []>} : vector<16x32xf32>, vector<32x32xf32>, vector<16x32xf32> -> vector<16x32xf32>
    %31 = vector.extract_strided_slice %1 {offsets = [5, 0], sizes = [1, 32], strides = [1, 1]} : vector<32x64xf32> to vector<1x32xf32>
    %32 = vector.broadcast %31 : vector<1x32xf32> to vector<16x32xf32>
    %33 = arith.addf %30, %32 : vector<16x32xf32>
    %c64 = arith.constant 64 : index
    %c0_12 = arith.constant 0 : index
    %34 = vector.load %arg3[%c64, %c0_12] : memref<192x32xf32, #tpu.memory_space<vmem>>, vector<32x32xf32>
    %cst_13 = arith.constant dense<0.000000e+00> : vector<16x32xf32>
    %35 = tpu.matmul %23, %34, %cst_13 {dimension_numbers = #tpu.dot_dimension_numbers<[1], [0], [0], [1], [0, 0, 1, 1], [], []>} : vector<16x32xf32>, vector<32x32xf32>, vector<16x32xf32> -> vector<16x32xf32>
    %36 = vector.extract_strided_slice %1 {offsets = [6, 0], sizes = [1, 32], strides = [1, 1]} : vector<32x64xf32> to vector<1x32xf32>
    %37 = vector.broadcast %36 : vector<1x32xf32> to vector<16x32xf32>
    %38 = arith.addf %35, %37 : vector<16x32xf32>
    %39 = vector.extract_strided_slice %1 {offsets = [16, 0], sizes = [16, 16], strides = [1, 1]} : vector<32x64xf32> to vector<16x16xf32>
    %cst_14 = arith.constant 0.000000e+00 : f32
    %40 = vector.broadcast %cst_14 : f32 to vector<16x32xf32>
    %41 = vector.extract_strided_slice %28 {offsets = [0, 0], sizes = [16, 8], strides = [1, 1]} : vector<16x32xf32> to vector<16x8xf32>
    %42 = vector.extract_strided_slice %33 {offsets = [0, 0], sizes = [16, 8], strides = [1, 1]} : vector<16x32xf32> to vector<16x8xf32>
    %43 = vector.extract_strided_slice %38 {offsets = [0, 0], sizes = [16, 8], strides = [1, 1]} : vector<16x32xf32> to vector<16x8xf32>
    %44 = tpu.transpose %42, [1, 0] : vector<16x8xf32> -> vector<8x16xf32>
    %cst_15 = arith.constant dense<0.000000e+00> : vector<16x16xf32>
    %45 = tpu.matmul %41, %44, %cst_15 {dimension_numbers = #tpu.dot_dimension_numbers<[1], [0], [0], [1], [0, 0, 1, 1], [], []>} : vector<16x8xf32>, vector<8x16xf32>, vector<16x16xf32> -> vector<16x16xf32>
    %46 = arith.addf %45, %39 : vector<16x16xf32>
    %cst_16 = arith.constant dense<0xFF800000> : vector<16xf32>
    %47 = vector.multi_reduction <maximumf>, %46, %cst_16 [1] : vector<16x16xf32> to vector<16xf32>
    %48 = vector.shape_cast %47 : vector<16xf32> to vector<16x1xf32>
    %49 = vector.broadcast %48 : vector<16x1xf32> to vector<16x16xf32>
    %50 = arith.subf %46, %49 : vector<16x16xf32>
    %51 = math.exp %50 : vector<16x16xf32>
    %cst_17 = arith.constant dense<0.000000e+00> : vector<16xf32>
    %52 = vector.multi_reduction <add>, %51, %cst_17 [1] : vector<16x16xf32> to vector<16xf32>
    %53 = vector.shape_cast %52 : vector<16xf32> to vector<16x1xf32>
    %54 = tpu.reciprocal %53 {approx = true} : vector<16x1xf32> -> vector<16x1xf32>
    %55 = arith.mulf %53, %54 : vector<16x1xf32>
    %cst_18 = arith.constant 2.000000e+00 : f32
    %56 = vector.broadcast %cst_18 : f32 to vector<16x1xf32>
    %57 = arith.subf %56, %55 : vector<16x1xf32>
    %58 = arith.mulf %54, %57 : vector<16x1xf32>
    %59 = vector.broadcast %58 : vector<16x1xf32> to vector<16x16xf32>
    %60 = arith.mulf %51, %59 : vector<16x16xf32>
    %cst_19 = arith.constant dense<0.000000e+00> : vector<16x8xf32>
    %61 = tpu.matmul %60, %43, %cst_19 {dimension_numbers = #tpu.dot_dimension_numbers<[1], [0], [0], [1], [0, 0, 1, 1], [], []>} : vector<16x16xf32>, vector<16x8xf32>, vector<16x8xf32> -> vector<16x8xf32>
    %c96 = arith.constant 96 : index
    %c0_20 = arith.constant 0 : index
    %62 = vector.load %arg3[%c96, %c0_20] : memref<192x32xf32, #tpu.memory_space<vmem>>, vector<8x32xf32>
    %cst_21 = arith.constant dense<0.000000e+00> : vector<16x32xf32>
    %63 = tpu.matmul %61, %62, %cst_21 {dimension_numbers = #tpu.dot_dimension_numbers<[1], [0], [0], [1], [0, 0, 1, 1], [], []>} : vector<16x8xf32>, vector<8x32xf32>, vector<16x32xf32> -> vector<16x32xf32>
    %64 = arith.addf %40, %63 : vector<16x32xf32>
    %65 = vector.extract_strided_slice %28 {offsets = [0, 8], sizes = [16, 8], strides = [1, 1]} : vector<16x32xf32> to vector<16x8xf32>
    %66 = vector.extract_strided_slice %33 {offsets = [0, 8], sizes = [16, 8], strides = [1, 1]} : vector<16x32xf32> to vector<16x8xf32>
    %67 = vector.extract_strided_slice %38 {offsets = [0, 8], sizes = [16, 8], strides = [1, 1]} : vector<16x32xf32> to vector<16x8xf32>
    %68 = tpu.transpose %66, [1, 0] : vector<16x8xf32> -> vector<8x16xf32>
    %cst_22 = arith.constant dense<0.000000e+00> : vector<16x16xf32>
    %69 = tpu.matmul %65, %68, %cst_22 {dimension_numbers = #tpu.dot_dimension_numbers<[1], [0], [0], [1], [0, 0, 1, 1], [], []>} : vector<16x8xf32>, vector<8x16xf32>, vector<16x16xf32> -> vector<16x16xf32>
    %70 = arith.addf %69, %39 : vector<16x16xf32>
    %cst_23 = arith.constant dense<0xFF800000> : vector<16xf32>
    %71 = vector.multi_reduction <maximumf>, %70, %cst_23 [1] : vector<16x16xf32> to vector<16xf32>
    %72 = vector.shape_cast %71 : vector<16xf32> to vector<16x1xf32>
    %73 = vector.broadcast %72 : vector<16x1xf32> to vector<16x16xf32>
    %74 = arith.subf %70, %73 : vector<16x16xf32>
    %75 = math.exp %74 : vector<16x16xf32>
    %cst_24 = arith.constant dense<0.000000e+00> : vector<16xf32>
    %76 = vector.multi_reduction <add>, %75, %cst_24 [1] : vector<16x16xf32> to vector<16xf32>
    %77 = vector.shape_cast %76 : vector<16xf32> to vector<16x1xf32>
    %78 = tpu.reciprocal %77 {approx = true} : vector<16x1xf32> -> vector<16x1xf32>
    %79 = arith.mulf %77, %78 : vector<16x1xf32>
    %cst_25 = arith.constant 2.000000e+00 : f32
    %80 = vector.broadcast %cst_25 : f32 to vector<16x1xf32>
    %81 = arith.subf %80, %79 : vector<16x1xf32>
    %82 = arith.mulf %78, %81 : vector<16x1xf32>
    %83 = vector.broadcast %82 : vector<16x1xf32> to vector<16x16xf32>
    %84 = arith.mulf %75, %83 : vector<16x16xf32>
    %cst_26 = arith.constant dense<0.000000e+00> : vector<16x8xf32>
    %85 = tpu.matmul %84, %67, %cst_26 {dimension_numbers = #tpu.dot_dimension_numbers<[1], [0], [0], [1], [0, 0, 1, 1], [], []>} : vector<16x16xf32>, vector<16x8xf32>, vector<16x8xf32> -> vector<16x8xf32>
    %c104 = arith.constant 104 : index
    %c0_27 = arith.constant 0 : index
    %86 = vector.load %arg3[%c104, %c0_27] : memref<192x32xf32, #tpu.memory_space<vmem>>, vector<8x32xf32>
    %cst_28 = arith.constant dense<0.000000e+00> : vector<16x32xf32>
    %87 = tpu.matmul %85, %86, %cst_28 {dimension_numbers = #tpu.dot_dimension_numbers<[1], [0], [0], [1], [0, 0, 1, 1], [], []>} : vector<16x8xf32>, vector<8x32xf32>, vector<16x32xf32> -> vector<16x32xf32>
    %88 = arith.addf %64, %87 : vector<16x32xf32>
    %89 = vector.extract_strided_slice %28 {offsets = [0, 16], sizes = [16, 8], strides = [1, 1]} : vector<16x32xf32> to vector<16x8xf32>
    %90 = vector.extract_strided_slice %33 {offsets = [0, 16], sizes = [16, 8], strides = [1, 1]} : vector<16x32xf32> to vector<16x8xf32>
    %91 = vector.extract_strided_slice %38 {offsets = [0, 16], sizes = [16, 8], strides = [1, 1]} : vector<16x32xf32> to vector<16x8xf32>
    %92 = tpu.transpose %90, [1, 0] : vector<16x8xf32> -> vector<8x16xf32>
    %cst_29 = arith.constant dense<0.000000e+00> : vector<16x16xf32>
    %93 = tpu.matmul %89, %92, %cst_29 {dimension_numbers = #tpu.dot_dimension_numbers<[1], [0], [0], [1], [0, 0, 1, 1], [], []>} : vector<16x8xf32>, vector<8x16xf32>, vector<16x16xf32> -> vector<16x16xf32>
    %94 = arith.addf %93, %39 : vector<16x16xf32>
    %cst_30 = arith.constant dense<0xFF800000> : vector<16xf32>
    %95 = vector.multi_reduction <maximumf>, %94, %cst_30 [1] : vector<16x16xf32> to vector<16xf32>
    %96 = vector.shape_cast %95 : vector<16xf32> to vector<16x1xf32>
    %97 = vector.broadcast %96 : vector<16x1xf32> to vector<16x16xf32>
    %98 = arith.subf %94, %97 : vector<16x16xf32>
    %99 = math.exp %98 : vector<16x16xf32>
    %cst_31 = arith.constant dense<0.000000e+00> : vector<16xf32>
    %100 = vector.multi_reduction <add>, %99, %cst_31 [1] : vector<16x16xf32> to vector<16xf32>
    %101 = vector.shape_cast %100 : vector<16xf32> to vector<16x1xf32>
    %102 = tpu.reciprocal %101 {approx = true} : vector<16x1xf32> -> vector<16x1xf32>
    %103 = arith.mulf %101, %102 : vector<16x1xf32>
    %cst_32 = arith.constant 2.000000e+00 : f32
    %104 = vector.broadcast %cst_32 : f32 to vector<16x1xf32>
    %105 = arith.subf %104, %103 : vector<16x1xf32>
    %106 = arith.mulf %102, %105 : vector<16x1xf32>
    %107 = vector.broadcast %106 : vector<16x1xf32> to vector<16x16xf32>
    %108 = arith.mulf %99, %107 : vector<16x16xf32>
    %cst_33 = arith.constant dense<0.000000e+00> : vector<16x8xf32>
    %109 = tpu.matmul %108, %91, %cst_33 {dimension_numbers = #tpu.dot_dimension_numbers<[1], [0], [0], [1], [0, 0, 1, 1], [], []>} : vector<16x16xf32>, vector<16x8xf32>, vector<16x8xf32> -> vector<16x8xf32>
    %c112 = arith.constant 112 : index
    %c0_34 = arith.constant 0 : index
    %110 = vector.load %arg3[%c112, %c0_34] : memref<192x32xf32, #tpu.memory_space<vmem>>, vector<8x32xf32>
    %cst_35 = arith.constant dense<0.000000e+00> : vector<16x32xf32>
    %111 = tpu.matmul %109, %110, %cst_35 {dimension_numbers = #tpu.dot_dimension_numbers<[1], [0], [0], [1], [0, 0, 1, 1], [], []>} : vector<16x8xf32>, vector<8x32xf32>, vector<16x32xf32> -> vector<16x32xf32>
    %112 = arith.addf %88, %111 : vector<16x32xf32>
    %113 = vector.extract_strided_slice %28 {offsets = [0, 24], sizes = [16, 8], strides = [1, 1]} : vector<16x32xf32> to vector<16x8xf32>
    %114 = vector.extract_strided_slice %33 {offsets = [0, 24], sizes = [16, 8], strides = [1, 1]} : vector<16x32xf32> to vector<16x8xf32>
    %115 = vector.extract_strided_slice %38 {offsets = [0, 24], sizes = [16, 8], strides = [1, 1]} : vector<16x32xf32> to vector<16x8xf32>
    %116 = tpu.transpose %114, [1, 0] : vector<16x8xf32> -> vector<8x16xf32>
    %cst_36 = arith.constant dense<0.000000e+00> : vector<16x16xf32>
    %117 = tpu.matmul %113, %116, %cst_36 {dimension_numbers = #tpu.dot_dimension_numbers<[1], [0], [0], [1], [0, 0, 1, 1], [], []>} : vector<16x8xf32>, vector<8x16xf32>, vector<16x16xf32> -> vector<16x16xf32>
    %118 = arith.addf %117, %39 : vector<16x16xf32>
    %cst_37 = arith.constant dense<0xFF800000> : vector<16xf32>
    %119 = vector.multi_reduction <maximumf>, %118, %cst_37 [1] : vector<16x16xf32> to vector<16xf32>
    %120 = vector.shape_cast %119 : vector<16xf32> to vector<16x1xf32>
    %121 = vector.broadcast %120 : vector<16x1xf32> to vector<16x16xf32>
    %122 = arith.subf %118, %121 : vector<16x16xf32>
    %123 = math.exp %122 : vector<16x16xf32>
    %cst_38 = arith.constant dense<0.000000e+00> : vector<16xf32>
    %124 = vector.multi_reduction <add>, %123, %cst_38 [1] : vector<16x16xf32> to vector<16xf32>
    %125 = vector.shape_cast %124 : vector<16xf32> to vector<16x1xf32>
    %126 = tpu.reciprocal %125 {approx = true} : vector<16x1xf32> -> vector<16x1xf32>
    %127 = arith.mulf %125, %126 : vector<16x1xf32>
    %cst_39 = arith.constant 2.000000e+00 : f32
    %128 = vector.broadcast %cst_39 : f32 to vector<16x1xf32>
    %129 = arith.subf %128, %127 : vector<16x1xf32>
    %130 = arith.mulf %126, %129 : vector<16x1xf32>
    %131 = vector.broadcast %130 : vector<16x1xf32> to vector<16x16xf32>
    %132 = arith.mulf %123, %131 : vector<16x16xf32>
    %cst_40 = arith.constant dense<0.000000e+00> : vector<16x8xf32>
    %133 = tpu.matmul %132, %115, %cst_40 {dimension_numbers = #tpu.dot_dimension_numbers<[1], [0], [0], [1], [0, 0, 1, 1], [], []>} : vector<16x16xf32>, vector<16x8xf32>, vector<16x8xf32> -> vector<16x8xf32>
    %c120 = arith.constant 120 : index
    %c0_41 = arith.constant 0 : index
    %134 = vector.load %arg3[%c120, %c0_41] : memref<192x32xf32, #tpu.memory_space<vmem>>, vector<8x32xf32>
    %cst_42 = arith.constant dense<0.000000e+00> : vector<16x32xf32>
    %135 = tpu.matmul %133, %134, %cst_42 {dimension_numbers = #tpu.dot_dimension_numbers<[1], [0], [0], [1], [0, 0, 1, 1], [], []>} : vector<16x8xf32>, vector<8x32xf32>, vector<16x32xf32> -> vector<16x32xf32>
    %136 = arith.addf %112, %135 : vector<16x32xf32>
    %137 = arith.addf %0, %136 : vector<16x32xf32>
    %138 = vector.extract_strided_slice %1 {offsets = [7, 0], sizes = [1, 32], strides = [1, 1]} : vector<32x64xf32> to vector<1x32xf32>
    %139 = vector.broadcast %138 : vector<1x32xf32> to vector<16x32xf32>
    %140 = arith.addf %137, %139 : vector<16x32xf32>
    %141 = vector.extract_strided_slice %1 {offsets = [2, 0], sizes = [1, 32], strides = [1, 1]} : vector<32x64xf32> to vector<1x32xf32>
    %142 = vector.extract_strided_slice %1 {offsets = [3, 0], sizes = [1, 32], strides = [1, 1]} : vector<32x64xf32> to vector<1x32xf32>
    %cst_43 = arith.constant dense<0.000000e+00> : vector<16xf32>
    %143 = vector.multi_reduction <add>, %140, %cst_43 [1] : vector<16x32xf32> to vector<16xf32>
    %144 = vector.shape_cast %143 : vector<16xf32> to vector<16x1xf32>
    %cst_44 = arith.constant 3.200000e+01 : f32
    %145 = vector.broadcast %cst_44 : f32 to vector<16x1xf32>
    %146 = arith.divf %144, %145 : vector<16x1xf32>
    %147 = vector.broadcast %146 : vector<16x1xf32> to vector<16x32xf32>
    %148 = arith.subf %140, %147 : vector<16x32xf32>
    %149 = arith.mulf %148, %148 : vector<16x32xf32>
    %cst_45 = arith.constant dense<0.000000e+00> : vector<16xf32>
    %150 = vector.multi_reduction <add>, %149, %cst_45 [1] : vector<16x32xf32> to vector<16xf32>
    %151 = vector.shape_cast %150 : vector<16xf32> to vector<16x1xf32>
    %cst_46 = arith.constant 3.200000e+01 : f32
    %152 = vector.broadcast %cst_46 : f32 to vector<16x1xf32>
    %153 = arith.divf %151, %152 : vector<16x1xf32>
    %cst_47 = arith.constant 9.99999996E-13 : f32
    %154 = vector.broadcast %cst_47 : f32 to vector<16x1xf32>
    %155 = arith.addf %153, %154 : vector<16x1xf32>
    %156 = math.rsqrt %155 : vector<16x1xf32>
    %157 = vector.broadcast %156 : vector<16x1xf32> to vector<16x32xf32>
    %158 = arith.mulf %148, %157 : vector<16x32xf32>
    %159 = vector.broadcast %141 : vector<1x32xf32> to vector<16x32xf32>
    %160 = arith.mulf %158, %159 : vector<16x32xf32>
    %161 = vector.broadcast %142 : vector<1x32xf32> to vector<16x32xf32>
    %162 = arith.addf %160, %161 : vector<16x32xf32>
    %c0_48 = arith.constant 0 : index
    %c0_49 = arith.constant 0 : index
    %163 = vector.load %arg4[%c0_48, %c0_49] : memref<32x64xf32, #tpu.memory_space<vmem>>, vector<32x64xf32>
    %cst_50 = arith.constant dense<0.000000e+00> : vector<16x64xf32>
    %164 = tpu.matmul %162, %163, %cst_50 {dimension_numbers = #tpu.dot_dimension_numbers<[1], [0], [0], [1], [0, 0, 1, 1], [], []>} : vector<16x32xf32>, vector<32x64xf32>, vector<16x64xf32> -> vector<16x64xf32>
    %165 = vector.extract_strided_slice %1 {offsets = [10, 0], sizes = [1, 64], strides = [1, 1]} : vector<32x64xf32> to vector<1x64xf32>
    %166 = vector.broadcast %165 : vector<1x64xf32> to vector<16x64xf32>
    %167 = arith.addf %164, %166 : vector<16x64xf32>
    %cst_51 = arith.constant 5.000000e-01 : f32
    %168 = vector.broadcast %cst_51 : f32 to vector<16x64xf32>
    %169 = arith.mulf %168, %167 : vector<16x64xf32>
    %cst_52 = arith.constant 0.707106769 : f32
    %170 = vector.broadcast %cst_52 : f32 to vector<16x64xf32>
    %171 = arith.mulf %167, %170 : vector<16x64xf32>
    %172 = math.erf %171 : vector<16x64xf32>
    %cst_53 = arith.constant 1.000000e+00 : f32
    %173 = vector.broadcast %cst_53 : f32 to vector<16x64xf32>
    %174 = arith.addf %173, %172 : vector<16x64xf32>
    %175 = arith.mulf %169, %174 : vector<16x64xf32>
    %c128 = arith.constant 128 : index
    %c0_54 = arith.constant 0 : index
    %176 = vector.load %arg3[%c128, %c0_54] : memref<192x32xf32, #tpu.memory_space<vmem>>, vector<64x32xf32>
    %cst_55 = arith.constant dense<0.000000e+00> : vector<16x32xf32>
    %177 = tpu.matmul %175, %176, %cst_55 {dimension_numbers = #tpu.dot_dimension_numbers<[1], [0], [0], [1], [0, 0, 1, 1], [], []>} : vector<16x64xf32>, vector<64x32xf32>, vector<16x32xf32> -> vector<16x32xf32>
    %178 = vector.extract_strided_slice %1 {offsets = [8, 0], sizes = [1, 32], strides = [1, 1]} : vector<32x64xf32> to vector<1x32xf32>
    %179 = vector.broadcast %178 : vector<1x32xf32> to vector<16x32xf32>
    %180 = arith.addf %177, %179 : vector<16x32xf32>
    %181 = arith.addf %140, %180 : vector<16x32xf32>
    %182 = vector.extract_strided_slice %1 {offsets = [9, 0], sizes = [1, 32], strides = [1, 1]} : vector<32x64xf32> to vector<1x32xf32>
    %183 = vector.broadcast %182 : vector<1x32xf32> to vector<16x32xf32>
    %184 = arith.mulf %181, %183 : vector<16x32xf32>
    %cst_56 = arith.constant dense<0.000000e+00> : vector<16xf32>
    %185 = vector.multi_reduction <add>, %184, %cst_56 [1] : vector<16x32xf32> to vector<16xf32>
    %186 = vector.shape_cast %185 : vector<16xf32> to vector<16x1xf32>
    %187 = vector.extract_strided_slice %1 {offsets = [11, 0], sizes = [1, 1], strides = [1, 1]} : vector<32x64xf32> to vector<1x1xf32>
    %188 = vector.broadcast %187 : vector<1x1xf32> to vector<16x1xf32>
    %189 = arith.addf %186, %188 : vector<16x1xf32>
    %190 = arith.negf %189 : vector<16x1xf32>
    %191 = math.exp %190 : vector<16x1xf32>
    %cst_57 = arith.constant 1.000000e+00 : f32
    %192 = vector.broadcast %cst_57 : f32 to vector<16x1xf32>
    %193 = arith.addf %192, %191 : vector<16x1xf32>
    %194 = arith.divf %192, %193 : vector<16x1xf32>
    %c0_58 = arith.constant 0 : index
    %c0_59 = arith.constant 0 : index
    %195 = vector.load %arg2[%c0_58, %c0_59] : memref<16x32xf32, #tpu.memory_space<vmem>>, vector<16x32xf32>
    %cst_60 = arith.constant 1.000000e+00 : f32
    %196 = vector.broadcast %cst_60 : f32 to vector<16x1xf32>
    %197 = arith.subf %196, %194 : vector<16x1xf32>
    %198 = vector.broadcast %197 : vector<16x1xf32> to vector<16x32xf32>
    %199 = arith.mulf %181, %198 : vector<16x32xf32>
    %200 = vector.broadcast %194 : vector<16x1xf32> to vector<16x32xf32>
    %201 = arith.mulf %195, %200 : vector<16x32xf32>
    %202 = arith.addf %199, %201 : vector<16x32xf32>
    %c0_61 = arith.constant 0 : index
    %c0_62 = arith.constant 0 : index
    %203 = vector.load %arg6[%c0_61, %c0_62] : memref<16x32xf32, #tpu.memory_space<vmem>>, vector<16x32xf32>
    tpu.vector_store %arg6[%c0_61, %c0_62], %202 {strides = array<i32>} : memref<16x32xf32, #tpu.memory_space<vmem>>, vector<16x32xf32>,
    return
  }
  func.func @transform_0(%arg0: i32) -> (i32, i32) {
    %c0_i32 = arith.constant 0 : i32
    %c0_i32_0 = arith.constant 0 : i32
    %c0_i32_1 = arith.constant 0 : i32
    return %c0_i32, %c0_i32_0 : i32, i32
  }
  func.func @transform_1(%arg0: i32) -> (i32, i32) {
    %c0_i32 = arith.constant 0 : i32
    %c0_i32_0 = arith.constant 0 : i32
    %c0_i32_1 = arith.constant 0 : i32
    return %c0_i32, %c0_i32_0 : i32, i32
  }
  func.func @transform_2(%arg0: i32) -> (i32, i32) {
    %c0_i32 = arith.constant 0 : i32
    %c0_i32_0 = arith.constant 0 : i32
    %c0_i32_1 = arith.constant 0 : i32
    return %c0_i32, %c0_i32_0 : i32, i32
  }
  func.func @transform_3(%arg0: i32) -> (i32, i32) {
    %c0_i32 = arith.constant 0 : i32
    %c0_i32_0 = arith.constant 0 : i32
    %c0_i32_1 = arith.constant 0 : i32
    return %c0_i32, %c0_i32_0 : i32, i32
  }
  func.func @transform_4(%arg0: i32) -> (i32, i32) {
    %c0_i32 = arith.constant 0 : i32
    %c0_i32_0 = arith.constant 0 : i32
    %c0_i32_1 = arith.constant 0 : i32
    return %c0_i32, %c0_i32_0 : i32, i32
  }
  func.func @transform_5(%arg0: i32) -> (i32, i32) {
    %c0_i32 = arith.constant 0 : i32
    %c0_i32_0 = arith.constant 0 : i32
    %c0_i32_1 = arith.constant 0 : i32
    return %c0_i32, %c0_i32_0 : i32, i32
  }
}

</mosaic_0001>

<llo_original>
// kernel: tpu_custom_call.1
$region0: #{tpu_custom_call.1}
  #allocation0 [shape = 'u32[]', space=smem, size = 0x4, offset = 0x4, fixed_abs, tag = 'smem constant byte address 0x4 - core index']
  #allocation1 [shape = 'u32[144,128]{1,0:T(1,128)}', space=vmem, size = 0x12000, scoped, tag = 'internal scratch']
  %s0 = inlined_call_operand.vmem [shape: f32[16,32], index: 0, kind: input, shape index: {}]
  %s1 = inlined_call_operand.vmem [shape: f32[16,32], index: 1, kind: input, shape index: {}]
  %s2 = inlined_call_operand.vmem [shape: f32[192,32], index: 2, kind: input, shape index: {}]
  %s3 = inlined_call_operand.vmem [shape: f32[32,64], index: 3, kind: input, shape index: {}]
  %s4 = inlined_call_operand.vmem [shape: f32[32,64], index: 4, kind: input, shape index: {}]
  %s5 = inlined_call_operand.hbm [shape: f32[16,32], index: 5, kind: output, shape index: {}]
  %s6 = sld [smem:[#allocation0]]
  $region30: #{tpu_custom_call.1} parent=0
    _
  %s8 = ssub.s32 1, %s6
  %s9 = scalar_select 0, %s8, %s6
  $region1: #{tpu_custom_call.1} parent=0
    #allocation2 [shape = 'u8[8192]{0}', space=vmem, size = 0x2000, scoped, tag = 'output window, operand 0, single buffered']
    #allocation3 [shape = 's32[1]{0}', space=sflag, size = 0x4, scoped, tag = 'scoped memory for tpu_custom_call.1']
    %10 = vsyncpa [#allocation3], 0
    // Predicated region
    $region2: #{tpu_custom_call.1} parent=1 // pred_check
      _
    $region3: #{tpu_custom_call.1} parent=1 // pred_check_branch
      %12 = sbr.rel (0) target = $region5
    $region4: #{tpu_custom_call.1} parent=1 // pred_region
      _
    $region5: #{tpu_custom_call.1} parent=1 // pred_fallthru
      _
    // Predicated region
    $region6: #{tpu_custom_call.1} parent=1 // pred_check
      _
    $region7: #{tpu_custom_call.1} parent=1 // pred_check_branch
      %14 = sbr.rel (0) target = $region9
    $region8: #{tpu_custom_call.1} parent=1 // pred_region
      _
    $region9: #{tpu_custom_call.1} parent=1 // pred_fallthru
      _
    // Predicated region
    $region10: #{tpu_custom_call.1} parent=1 // pred_check
      _
    $region11: #{tpu_custom_call.1} parent=1 // pred_check_branch
      %16 = sbr.rel (0) target = $region13
    $region12: #{tpu_custom_call.1} parent=1 // pred_region
      _
    $region13: #{tpu_custom_call.1} parent=1 // pred_fallthru
      _
    // Predicated region
    $region14: #{tpu_custom_call.1} parent=1 // pred_check
      _
    $region15: #{tpu_custom_call.1} parent=1 // pred_check_branch
      %18 = sbr.rel (0) target = $region17
    $region16: #{tpu_custom_call.1} parent=1 // pred_region
      _
    $region17: #{tpu_custom_call.1} parent=1 // pred_fallthru
      _
    // Predicated region
    $region18: #{tpu_custom_call.1} parent=1 // pred_check
      _
    $region19: #{tpu_custom_call.1} parent=1 // pred_check_branch
      %20 = sbr.rel (0) target = $region21
    $region20: #{tpu_custom_call.1} parent=1 // pred_region
      _
    $region21: #{tpu_custom_call.1} parent=1 // pred_fallthru
      _
    %v21 = vld [vmem:[%s0] sm:$0xff]
    %v22 = vld [vmem:[%s0 + $0x8] sm:$0xff]
    %v23 = vld [vmem:[%s4] sm:$0xff]
    %v24 = vld [vmem:[%s4 + $0x8] sm:$0xff]
    %v25 = vld [vmem:[%s4 + $0x10] sm:$0xff]
    %v26 = vld [vmem:[%s4 + $0x18] sm:$0xff]
    %vm27 = vcmask 261120
    %v28 = vsel %vm27, %v21, 0.0
    %29 = vadd.xlane.f32.xlu0 %v28
    %v30 = vpop.xlane.xlu0 %29
    %v31 = vsel %vm27, %v22, 0.0
    %32 = vadd.xlane.f32.xlu0 %v31
    %v33 = vpop.xlane.xlu0 %32
    %v34 = vrcp.pop 32.0
    %v35 = vmul.f32 %v30, %v34
    %v36 = vmul.f32 %v33, %v34
    %v37 = vsub.f32 %v21, %v35
    %v38 = vsub.f32 %v22, %v36
    %v39 = vmul.f32 %v37, %v37
    %v40 = vmul.f32 %v38, %v38
    %v41 = vsel %vm27, %v39, 0.0
    %42 = vadd.xlane.f32.xlu0 %v41
    %v43 = vpop.xlane.xlu0 %42
    %v44 = vsel %vm27, %v40, 0.0
    %45 = vadd.xlane.f32.xlu0 %v44
    %v46 = vpop.xlane.xlu0 %45
    %v47 = vmul.f32 %v43, %v34
    %v48 = vmul.f32 %v46, %v34
    %v49 = vadd.f32 %v47, 1e-12
    %v50 = vadd.f32 %v48, 1e-12
    %v51 = vrsqrt.pop %v49
    %v52 = vrsqrt.pop %v50
    %v53 = vmul.f32 %v37, %v51
    %v54 = vmul.f32 %v38, %v52
    %v55 = vlaneseq
    %v56 = vshrl.u32 %v55, 7
    %v57 = vsub.s32 0, %v56
    %v58 = vrot.slane %v23, %v57
    %v59 = vmul.f32 %v53, %v58
    %v60 = vmul.f32 %v54, %v58
    %v61 = vlaneseq
    %v62 = vshrl.u32 %v61, 7
    %v63 = vsub.s32 1, %v62
    %v64 = vrot.slane %v23, %v63
    %v65 = vadd.f32 %v59, %v64
    %v66 = vadd.f32 %v60, %v64
    %v67 = vld [vmem:[%s2] sm:$0xff]
    %v68 = vld [vmem:[%s2 + $0x8] sm:$0xff]
    %v69 = vld [vmem:[%s2 + $0x10] sm:$0xff]
    %v70 = vld [vmem:[%s2 + $0x18] sm:$0xff]
    %v71 = vlaneseq
    %v72 = vshrl.u32 %v71, 7
    %v73 = vsub.s32 4, %v72
    %v74 = vrot.slane %v23, %v73
    %v76 = vsel %vm27, %v65, 0
    %v79 = vsel %vm27, %v66, 0
    %81 = vmatprep.subr.mxu0 0.0
    %82 = vmatpush1.msra.mxu0 %v67
    %83 = vmatprep.subr.mxu0 0.0
    %84 = vmatpush1.msra.mxu0 %v68
    %85 = vmatprep.subr.mxu0 0.0
    %86 = vmatpush1.msra.mxu0 %v69
    %87 = vmatprep.subr.mxu0 0.0
    %88 = vmatpush1.msra.mxu0 %v70
    %89 = vmatprep.subr.mxu0 0.0
    %90 = vmatpush1.msra.mxu0 0.0
    %91 = vmatprep.subr.mxu0 0.0
    %92 = vmatpush1.msra.mxu0 0.0
    %93 = vmatprep.subr.mxu0 0.0
    %94 = vmatpush1.msra.mxu0 0.0
    %95 = vmatprep.subr.mxu0 0.0
    %96 = vmatpush1.msra.mxu0 0.0
    %97 = vmatprep.subr.mxu0 0.0
    %98 = vmatpush1.msra.mxu0 0.0
    %99 = vmatprep.subr.mxu0 0.0
    %100 = vmatpush1.msra.mxu0 0.0
    %101 = vmatprep.subr.mxu0 0.0
    %102 = vmatpush1.msra.mxu0 0.0
    %103 = vmatprep.subr.mxu0 0.0
    %104 = vmatpush1.msra.mxu0 0.0
    %105 = vmatprep.subr.mxu0 0.0
    %106 = vmatpush1.msra.mxu0 0.0
    %107 = vmatprep.subr.mxu0 0.0
    %108 = vmatpush1.msra.mxu0 0.0
    %109 = vmatprep.subr.mxu0 0.0
    %110 = vmatpush1.msra.mxu0 0.0
    %111 = vmatprep.subr.mxu0 0.0
    %112 = vmatpush1.msra.mxu0 0.0
    %113 = vmatprep.subr.mxu0 0.0
    %114 = vmatpush1.msra.mxu0 0.0
    %115 = vmatprep.subr.mxu0 0.0
    %116 = vmatpush1.msra.mxu0 0.0
    %117 = vmatprep.subr.mxu0 0.0
    %118 = vmatpush1.msra.mxu0 0.0
    %119 = vmatprep.subr.mxu0 0.0
    %120 = vmatpush1.msra.mxu0 0.0
    %121 = vmatprep.subr.mxu0 0.0
    %122 = vmatpush1.msra.mxu0 0.0
    %123 = vmatprep.subr.mxu0 0.0
    %124 = vmatpush1.msra.mxu0 0.0
    %125 = vmatprep.subr.mxu0 0.0
    %126 = vmatpush1.msra.mxu0 0.0
    %127 = vmatprep.subr.mxu0 0.0
    %128 = vmatpush1.msra.mxu0 0.0
    %129 = vmatprep.subr.mxu0 0.0
    %130 = vmatpush1.msra.mxu0 0.0
    %131 = vmatprep.subr.mxu0 0.0
    %132 = vmatpush1.msra.mxu0 0.0
    %133 = vmatprep.subr.mxu0 0.0
    %134 = vmatpush1.msra.mxu0 0.0
    %135 = vmatprep.subr.mxu0 0.0
    %136 = vmatpush1.msra.mxu0 0.0
    %137 = vmatprep.subr.mxu0 0.0
    %138 = vmatpush1.msra.mxu0 0.0
    %139 = vmatprep.subr.mxu0 0.0
    %140 = vmatpush1.msra.mxu0 0.0
    %141 = vmatprep.subr.mxu0 0.0
    %142 = vmatpush1.msra.mxu0 0.0
    %143 = vmatprep.subr.mxu0 0.0
    %144 = vmatpush1.msra.mxu0 0.0
    %145 = vmatprep.mubr.f32.mxu0 0.0
    %146 = vmatmul.mubr.f32.gmra.mrb[0].mxu0 %v76
    %v147 = vpop.f32.mrb[0].mxu0
    %v148 = vadd.f32 %v74, %v147
    %v149 = vpop.f32.mrb[0].mxu0
    %150 = vmatprep.mubr.f32.mxu0 0.0
    %151 = vmatmul.mubr.f32.gmra.mrb[0].mxu0 %v79
    %v152 = vpop.f32.mrb[0].mxu0
    %v153 = vadd.f32 %v74, %v152
    %v154 = vpop.f32.mrb[0].mxu0
    %155 = vdwg.mxu0
    %v156 = vld [vmem:[%s2 + $0x20] sm:$0xff]
    %v157 = vld [vmem:[%s2 + $0x28] sm:$0xff]
    %v158 = vld [vmem:[%s2 + $0x30] sm:$0xff]
    %v159 = vld [vmem:[%s2 + $0x38] sm:$0xff]
    %v160 = vlaneseq
    %v161 = vshrl.u32 %v160, 7
    %v162 = vsub.s32 5, %v161
    %v163 = vrot.slane %v23, %v162
    %164 = vmatprep.subr.mxu0 0.0
    %165 = vmatpush1.msra.mxu0 %v156
    %166 = vmatprep.subr.mxu0 0.0
    %167 = vmatpush1.msra.mxu0 %v157
    %168 = vmatprep.subr.mxu0 0.0
    %169 = vmatpush1.msra.mxu0 %v158
    %170 = vmatprep.subr.mxu0 0.0
    %171 = vmatpush1.msra.mxu0 %v159
    %172 = vmatprep.subr.mxu0 0.0
    %173 = vmatpush1.msra.mxu0 0.0
    %174 = vmatprep.subr.mxu0 0.0
    %175 = vmatpush1.msra.mxu0 0.0
    %176 = vmatprep.subr.mxu0 0.0
    %177 = vmatpush1.msra.mxu0 0.0
    %178 = vmatprep.subr.mxu0 0.0
    %179 = vmatpush1.msra.mxu0 0.0
    %180 = vmatprep.subr.mxu0 0.0
    %181 = vmatpush1.msra.mxu0 0.0
    %182 = vmatprep.subr.mxu0 0.0
    %183 = vmatpush1.msra.mxu0 0.0
    %184 = vmatprep.subr.mxu0 0.0
    %185 = vmatpush1.msra.mxu0 0.0
    %186 = vmatprep.subr.mxu0 0.0
    %187 = vmatpush1.msra.mxu0 0.0
    %188 = vmatprep.subr.mxu0 0.0
    %189 = vmatpush1.msra.mxu0 0.0
    %190 = vmatprep.subr.mxu0 0.0
    %191 = vmatpush1.msra.mxu0 0.0
    %192 = vmatprep.subr.mxu0 0.0
    %193 = vmatpush1.msra.mxu0 0.0
    %194 = vmatprep.subr.mxu0 0.0
    %195 = vmatpush1.msra.mxu0 0.0
    %196 = vmatprep.subr.mxu0 0.0
    %197 = vmatpush1.msra.mxu0 0.0
    %198 = vmatprep.subr.mxu0 0.0
    %199 = vmatpush1.msra.mxu0 0.0
    %200 = vmatprep.subr.mxu0 0.0
    %201 = vmatpush1.msra.mxu0 0.0
    %202 = vmatprep.subr.mxu0 0.0
    %203 = vmatpush1.msra.mxu0 0.0
    %204 = vmatprep.subr.mxu0 0.0
    %205 = vmatpush1.msra.mxu0 0.0
    %206 = vmatprep.subr.mxu0 0.0
    %207 = vmatpush1.msra.mxu0 0.0
    %208 = vmatprep.subr.mxu0 0.0
    %209 = vmatpush1.msra.mxu0 0.0
    %210 = vmatprep.subr.mxu0 0.0
    %211 = vmatpush1.msra.mxu0 0.0
    %212 = vmatprep.subr.mxu0 0.0
    %213 = vmatpush1.msra.mxu0 0.0
    %214 = vmatprep.subr.mxu0 0.0
    %215 = vmatpush1.msra.mxu0 0.0
    %216 = vmatprep.subr.mxu0 0.0
    %217 = vmatpush1.msra.mxu0 0.0
    %218 = vmatprep.subr.mxu0 0.0
    %219 = vmatpush1.msra.mxu0 0.0
    %220 = vmatprep.subr.mxu0 0.0
    %221 = vmatpush1.msra.mxu0 0.0
    %222 = vmatprep.subr.mxu0 0.0
    %223 = vmatpush1.msra.mxu0 0.0
    %224 = vmatprep.subr.mxu0 0.0
    %225 = vmatpush1.msra.mxu0 0.0
    %226 = vmatprep.subr.mxu0 0.0
    %227 = vmatpush1.msra.mxu0 0.0
    %228 = vmatprep.mubr.f32.mxu0 0.0
    %229 = vmatmul.mubr.f32.gmra.mrb[0].mxu0 %v76
    %v230 = vpop.f32.mrb[0].mxu0
    %v231 = vadd.f32 %v163, %v230
    %v232 = vpop.f32.mrb[0].mxu0
    %233 = vmatprep.mubr.f32.mxu0 0.0
    %234 = vmatmul.mubr.f32.gmra.mrb[0].mxu0 %v79
    %v235 = vpop.f32.mrb[0].mxu0
    %v236 = vadd.f32 %v163, %v235
    %v237 = vpop.f32.mrb[0].mxu0
    %238 = vdwg.mxu0
    %v239 = vld [vmem:[%s2 + $0x40] sm:$0xff]
    %v240 = vld [vmem:[%s2 + $0x48] sm:$0xff]
    %v241 = vld [vmem:[%s2 + $0x50] sm:$0xff]
    %v242 = vld [vmem:[%s2 + $0x58] sm:$0xff]
    %v243 = vlaneseq
    %v244 = vshrl.u32 %v243, 7
    %v245 = vsub.s32 6, %v244
    %v246 = vrot.slane %v23, %v245
    %247 = vmatprep.subr.mxu0 0.0
    %248 = vmatpush1.msra.mxu0 %v239
    %249 = vmatprep.subr.mxu0 0.0
    %250 = vmatpush1.msra.mxu0 %v240
    %251 = vmatprep.subr.mxu0 0.0
    %252 = vmatpush1.msra.mxu0 %v241
    %253 = vmatprep.subr.mxu0 0.0
    %254 = vmatpush1.msra.mxu0 %v242
    %255 = vmatprep.subr.mxu0 0.0
    %256 = vmatpush1.msra.mxu0 0.0
    %257 = vmatprep.subr.mxu0 0.0
    %258 = vmatpush1.msra.mxu0 0.0
    %259 = vmatprep.subr.mxu0 0.0
    %260 = vmatpush1.msra.mxu0 0.0
    %261 = vmatprep.subr.mxu0 0.0
    %262 = vmatpush1.msra.mxu0 0.0
    %263 = vmatprep.subr.mxu0 0.0
    %264 = vmatpush1.msra.mxu0 0.0
    %265 = vmatprep.subr.mxu0 0.0
    %266 = vmatpush1.msra.mxu0 0.0
    %267 = vmatprep.subr.mxu0 0.0
    %268 = vmatpush1.msra.mxu0 0.0
    %269 = vmatprep.subr.mxu0 0.0
    %270 = vmatpush1.msra.mxu0 0.0
    %271 = vmatprep.subr.mxu0 0.0
    %272 = vmatpush1.msra.mxu0 0.0
    %273 = vmatprep.subr.mxu0 0.0
    %274 = vmatpush1.msra.mxu0 0.0
    %275 = vmatprep.subr.mxu0 0.0
    %276 = vmatpush1.msra.mxu0 0.0
    %277 = vmatprep.subr.mxu0 0.0
    %278 = vmatpush1.msra.mxu0 0.0
    %279 = vmatprep.subr.mxu0 0.0
    %280 = vmatpush1.msra.mxu0 0.0
    %281 = vmatprep.subr.mxu0 0.0
    %282 = vmatpush1.msra.mxu0 0.0
    %283 = vmatprep.subr.mxu0 0.0
    %284 = vmatpush1.msra.mxu0 0.0
    %285 = vmatprep.subr.mxu0 0.0
    %286 = vmatpush1.msra.mxu0 0.0
    %287 = vmatprep.subr.mxu0 0.0
    %288 = vmatpush1.msra.mxu0 0.0
    %289 = vmatprep.subr.mxu0 0.0
    %290 = vmatpush1.msra.mxu0 0.0
    %291 = vmatprep.subr.mxu0 0.0
    %292 = vmatpush1.msra.mxu0 0.0
    %293 = vmatprep.subr.mxu0 0.0
    %294 = vmatpush1.msra.mxu0 0.0
    %295 = vmatprep.subr.mxu0 0.0
    %296 = vmatpush1.msra.mxu0 0.0
    %297 = vmatprep.subr.mxu0 0.0
    %298 = vmatpush1.msra.mxu0 0.0
    %299 = vmatprep.subr.mxu0 0.0
    %300 = vmatpush1.msra.mxu0 0.0
    %301 = vmatprep.subr.mxu0 0.0
    %302 = vmatpush1.msra.mxu0 0.0
    %303 = vmatprep.subr.mxu0 0.0
    %304 = vmatpush1.msra.mxu0 0.0
    %305 = vmatprep.subr.mxu0 0.0
    %306 = vmatpush1.msra.mxu0 0.0
    %307 = vmatprep.subr.mxu0 0.0
    %308 = vmatpush1.msra.mxu0 0.0
    %309 = vmatprep.subr.mxu0 0.0
    %310 = vmatpush1.msra.mxu0 0.0
    %311 = vmatprep.mubr.f32.mxu0 0.0
    %312 = vmatmul.mubr.f32.gmra.mrb[0].mxu0 %v76
    %v313 = vpop.f32.mrb[0].mxu0
    %v314 = vadd.f32 %v246, %v313
    %v315 = vpop.f32.mrb[0].mxu0
    %316 = vmatprep.mubr.f32.mxu0 0.0
    %317 = vmatmul.mubr.f32.gmra.mrb[0].mxu0 %v79
    %v318 = vpop.f32.mrb[0].mxu0
    %v319 = vadd.f32 %v246, %v318
    %v320 = vpop.f32.mrb[0].mxu0
    %321 = vdwg.mxu0
    %vm322 = vcmask 64512
    %v324 = vsel %vm322, %v148, 0
    %v327 = vsel %vm322, %v153, 0
    %v330 = vsel %vm322, %v231, 0
    %v333 = vsel %vm322, %v236, 0
    %335 = vmatprep.subr.mxu0 0.0
    %336 = vmatpush1.xpose.msra.mxu0 %v330
    %337 = vmatprep.subr.mxu0 0.0
    %338 = vmatpush1.xpose.msra.mxu0 %v333
    %339 = vmatprep.subr.mxu0 0.0
    %340 = vmatpush1.xpose.msra.mxu0 0.0
    %341 = vmatprep.subr.mxu0 0.0
    %342 = vmatpush1.xpose.msra.mxu0 0.0
    %343 = vmatprep.subr.mxu0 0.0
    %344 = vmatpush1.xpose.msra.mxu0 0.0
    %345 = vmatprep.subr.mxu0 0.0
    %346 = vmatpush1.xpose.msra.mxu0 0.0
    %347 = vmatprep.subr.mxu0 0.0
    %348 = vmatpush1.xpose.msra.mxu0 0.0
    %349 = vmatprep.subr.mxu0 0.0
    %350 = vmatpush1.xpose.msra.mxu0 0.0
    %351 = vmatprep.subr.mxu0 0.0
    %352 = vmatpush1.xpose.msra.mxu0 0.0
    %353 = vmatprep.subr.mxu0 0.0
    %354 = vmatpush1.xpose.msra.mxu0 0.0
    %355 = vmatprep.subr.mxu0 0.0
    %356 = vmatpush1.xpose.msra.mxu0 0.0
    %357 = vmatprep.subr.mxu0 0.0
    %358 = vmatpush1.xpose.msra.mxu0 0.0
    %359 = vmatprep.subr.mxu0 0.0
    %360 = vmatpush1.xpose.msra.mxu0 0.0
    %361 = vmatprep.subr.mxu0 0.0
    %362 = vmatpush1.xpose.msra.mxu0 0.0
    %363 = vmatprep.subr.mxu0 0.0
    %364 = vmatpush1.xpose.msra.mxu0 0.0
    %365 = vmatprep.subr.mxu0 0.0
    %366 = vmatpush1.xpose.msra.mxu0 0.0
    %367 = vmatprep.subr.mxu0 0.0
    %368 = vmatpush1.xpose.msra.mxu0 0.0
    %369 = vmatprep.subr.mxu0 0.0
    %370 = vmatpush1.xpose.msra.mxu0 0.0
    %371 = vmatprep.subr.mxu0 0.0
    %372 = vmatpush1.xpose.msra.mxu0 0.0
    %373 = vmatprep.subr.mxu0 0.0
    %374 = vmatpush1.xpose.msra.mxu0 0.0
    %375 = vmatprep.subr.mxu0 0.0
    %376 = vmatpush1.xpose.msra.mxu0 0.0
    %377 = vmatprep.subr.mxu0 0.0
    %378 = vmatpush1.xpose.msra.mxu0 0.0
    %379 = vmatprep.subr.mxu0 0.0
    %380 = vmatpush1.xpose.msra.mxu0 0.0
    %381 = vmatprep.subr.mxu0 0.0
    %382 = vmatpush1.xpose.msra.mxu0 0.0
    %383 = vmatprep.subr.mxu0 0.0
    %384 = vmatpush1.xpose.msra.mxu0 0.0
    %385 = vmatprep.subr.mxu0 0.0
    %386 = vmatpush1.xpose.msra.mxu0 0.0
    %387 = vmatprep.subr.mxu0 0.0
    %388 = vmatpush1.xpose.msra.mxu0 0.0
    %389 = vmatprep.subr.mxu0 0.0
    %390 = vmatpush1.xpose.msra.mxu0 0.0
    %391 = vmatprep.subr.mxu0 0.0
    %392 = vmatpush1.xpose.msra.mxu0 0.0
    %393 = vmatprep.subr.mxu0 0.0
    %394 = vmatpush1.xpose.msra.mxu0 0.0
    %395 = vmatprep.subr.mxu0 0.0
    %396 = vmatpush1.xpose.msra.mxu0 0.0
    %397 = vmatprep.subr.mxu0 0.0
    %398 = vmatpush1.xpose.msra.mxu0 0.0
    %399 = vmatprep.mubr.f32.mxu0 0.0
    %400 = vmatmul.mubr.f32.gmra.mrb[0].mxu0 %v324
    %v401 = vpop.f32.mrb[0].mxu0
    %v402 = vadd.f32 %v25, %v401
    %v403 = vpop.f32.mrb[0].mxu0
    %404 = vmatprep.mubr.f32.mxu0 0.0
    %405 = vmatmul.mubr.f32.gmra.mrb[0].mxu0 %v327
    %v406 = vpop.f32.mrb[0].mxu0
    %v407 = vadd.f32 %v26, %v406
    %v408 = vpop.f32.mrb[0].mxu0
    %409 = vdwg.mxu0
    %vm410 = vcmask 130048
    %v411 = vsel %vm410, %v402, -inf
    %412 = vmax.xlane.f32.xlu0 %v411
    %v413 = vpop.xlane.xlu0 %412
    %v414 = vsel %vm410, %v407, -inf
    %415 = vmax.xlane.f32.xlu0 %v414
    %v416 = vpop.xlane.xlu0 %415
    %v417 = vsub.f32 %v402, %v413
    %v418 = vsub.f32 %v407, %v416
    %v419 = vmul.f32 %v417, 1.442695
    %v420 = vpow.pop %v419
    %v421 = vmul.f32 %v418, 1.442695
    %v422 = vpow.pop %v421
    %v423 = vsel %vm410, %v420, 0.0
    %424 = vadd.xlane.f32.xlu0 %v423
    %v425 = vpop.xlane.xlu0 %424
    %v426 = vsel %vm410, %v422, 0.0
    %427 = vadd.xlane.f32.xlu0 %v426
    %v428 = vpop.xlane.xlu0 %427
    %v429 = vrcp.pop %v425
    %v430 = vrcp.pop %v428
    %v431 = vmul.f32 %v425, %v429
    %v432 = vmul.f32 %v428, %v430
    %v433 = vsub.f32 2.0, %v431
    %v434 = vsub.f32 2.0, %v432
    %v435 = vmul.f32 %v429, %v433
    %v436 = vmul.f32 %v430, %v434
    %v437 = vmul.f32 %v420, %v435
    %v438 = vmul.f32 %v422, %v436
    %v440 = vsel %vm410, %v437, 0
    %v443 = vsel %vm410, %v438, 0
    %445 = vmatprep.subr.mxu0 0.0
    %446 = vmatpush1.msra.mxu0 %v314
    %447 = vmatprep.subr.mxu0 0.0
    %448 = vmatpush1.msra.mxu0 %v319
    %449 = vmatprep.subr.mxu0 0.0
    %450 = vmatpush1.msra.mxu0 0.0
    %451 = vmatprep.subr.mxu0 0.0
    %452 = vmatpush1.msra.mxu0 0.0
    %453 = vmatprep.subr.mxu0 0.0
    %454 = vmatpush1.msra.mxu0 0.0
    %455 = vmatprep.subr.mxu0 0.0
    %456 = vmatpush1.msra.mxu0 0.0
    %457 = vmatprep.subr.mxu0 0.0
    %458 = vmatpush1.msra.mxu0 0.0
    %459 = vmatprep.subr.mxu0 0.0
    %460 = vmatpush1.msra.mxu0 0.0
    %461 = vmatprep.subr.mxu0 0.0
    %462 = vmatpush1.msra.mxu0 0.0
    %463 = vmatprep.subr.mxu0 0.0
    %464 = vmatpush1.msra.mxu0 0.0
    %465 = vmatprep.subr.mxu0 0.0
    %466 = vmatpush1.msra.mxu0 0.0
    %467 = vmatprep.subr.mxu0 0.0
    %468 = vmatpush1.msra.mxu0 0.0
    %469 = vmatprep.subr.mxu0 0.0
    %470 = vmatpush1.msra.mxu0 0.0
    %471 = vmatprep.subr.mxu0 0.0
    %472 = vmatpush1.msra.mxu0 0.0
    %473 = vmatprep.subr.mxu0 0.0
    %474 = vmatpush1.msra.mxu0 0.0
    %475 = vmatprep.subr.mxu0 0.0
    %476 = vmatpush1.msra.mxu0 0.0
    %477 = vmatprep.subr.mxu0 0.0
    %478 = vmatpush1.msra.mxu0 0.0
    %479 = vmatprep.subr.mxu0 0.0
    %480 = vmatpush1.msra.mxu0 0.0
    %481 = vmatprep.subr.mxu0 0.0
    %482 = vmatpush1.msra.mxu0 0.0
    %483 = vmatprep.subr.mxu0 0.0
    %484 = vmatpush1.msra.mxu0 0.0
    %485 = vmatprep.subr.mxu0 0.0
    %486 = vmatpush1.msra.mxu0 0.0
    %487 = vmatprep.subr.mxu0 0.0
    %488 = vmatpush1.msra.mxu0 0.0
    %489 = vmatprep.subr.mxu0 0.0
    %490 = vmatpush1.msra.mxu0 0.0
    %491 = vmatprep.subr.mxu0 0.0
    %492 = vmatpush1.msra.mxu0 0.0
    %493 = vmatprep.subr.mxu0 0.0
    %494 = vmatpush1.msra.mxu0 0.0
    %495 = vmatprep.subr.mxu0 0.0
    %496 = vmatpush1.msra.mxu0 0.0
    %497 = vmatprep.subr.mxu0 0.0
    %498 = vmatpush1.msra.mxu0 0.0
    %499 = vmatprep.subr.mxu0 0.0
    %500 = vmatpush1.msra.mxu0 0.0
    %501 = vmatprep.subr.mxu0 0.0
    %502 = vmatpush1.msra.mxu0 0.0
    %503 = vmatprep.subr.mxu0 0.0
    %504 = vmatpush1.msra.mxu0 0.0
    %505 = vmatprep.subr.mxu0 0.0
    %506 = vmatpush1.msra.mxu0 0.0
    %507 = vmatprep.subr.mxu0 0.0
    %508 = vmatpush1.msra.mxu0 0.0
    %509 = vmatprep.mubr.f32.mxu0 0.0
    %510 = vmatmul.mubr.f32.gmra.mrb[0].mxu0 %v440
    %v511 = vpop.f32.mrb[0].mxu0
    %v512 = vadd.f32 0.0, %v511
    %v513 = vpop.f32.mrb[0].mxu0
    %514 = vmatprep.mubr.f32.mxu0 0.0
    %515 = vmatmul.mubr.f32.gmra.mrb[0].mxu0 %v443
    %v516 = vpop.f32.mrb[0].mxu0
    %v517 = vadd.f32 0.0, %v516
    %v518 = vpop.f32.mrb[0].mxu0
    %519 = vdwg.mxu0
    %v520 = vld [vmem:[%s2 + $0x60] sm:$0xff]
    %521 = vrot.lane.b32.xlu0 %v148, 120
    %v522 = vpop.permute.xlu0 %521
    %523 = vrot.lane.b32.xlu0 %v153, 120
    %v524 = vpop.permute.xlu0 %523
    %525 = vrot.lane.b32.xlu0 %v231, 120
    %v526 = vpop.permute.xlu0 %525
    %527 = vrot.lane.b32.xlu0 %v236, 120
    %v528 = vpop.permute.xlu0 %527
    %v529 = vsel %vm322, %v522, 0
    %v531 = vsel %vm322, %v524, 0
    %v533 = vsel %vm322, %v526, 0
    %v535 = vsel %vm322, %v528, 0
    %537 = vmatprep.subr.mxu0 0.0
    %538 = vmatpush1.xpose.msra.mxu0 %v533
    %539 = vmatprep.subr.mxu0 0.0
    %540 = vmatpush1.xpose.msra.mxu0 %v535
    %541 = vmatprep.subr.mxu0 0.0
    %542 = vmatpush1.xpose.msra.mxu0 0.0
    %543 = vmatprep.subr.mxu0 0.0
    %544 = vmatpush1.xpose.msra.mxu0 0.0
    %545 = vmatprep.subr.mxu0 0.0
    %546 = vmatpush1.xpose.msra.mxu0 0.0
    %547 = vmatprep.subr.mxu0 0.0
    %548 = vmatpush1.xpose.msra.mxu0 0.0
    %549 = vmatprep.subr.mxu0 0.0
    %550 = vmatpush1.xpose.msra.mxu0 0.0
    %551 = vmatprep.subr.mxu0 0.0
    %552 = vmatpush1.xpose.msra.mxu0 0.0
    %553 = vmatprep.subr.mxu0 0.0
    %554 = vmatpush1.xpose.msra.mxu0 0.0
    %555 = vmatprep.subr.mxu0 0.0
    %556 = vmatpush1.xpose.msra.mxu0 0.0
    %557 = vmatprep.subr.mxu0 0.0
    %558 = vmatpush1.xpose.msra.mxu0 0.0
    %559 = vmatprep.subr.mxu0 0.0
    %560 = vmatpush1.xpose.msra.mxu0 0.0
    %561 = vmatprep.subr.mxu0 0.0
    %562 = vmatpush1.xpose.msra.mxu0 0.0
    %563 = vmatprep.subr.mxu0 0.0
    %564 = vmatpush1.xpose.msra.mxu0 0.0
    %565 = vmatprep.subr.mxu0 0.0
    %566 = vmatpush1.xpose.msra.mxu0 0.0
    %567 = vmatprep.subr.mxu0 0.0
    %568 = vmatpush1.xpose.msra.mxu0 0.0
    %569 = vmatprep.subr.mxu0 0.0
    %570 = vmatpush1.xpose.msra.mxu0 0.0
    %571 = vmatprep.subr.mxu0 0.0
    %572 = vmatpush1.xpose.msra.mxu0 0.0
    %573 = vmatprep.subr.mxu0 0.0
    %574 = vmatpush1.xpose.msra.mxu0 0.0
    %575 = vmatprep.subr.mxu0 0.0
    %576 = vmatpush1.xpose.msra.mxu0 0.0
    %577 = vmatprep.subr.mxu0 0.0
    %578 = vmatpush1.xpose.msra.mxu0 0.0
    %579 = vmatprep.subr.mxu0 0.0
    %580 = vmatpush1.xpose.msra.mxu0 0.0
    %581 = vmatprep.subr.mxu0 0.0
    %582 = vmatpush1.xpose.msra.mxu0 0.0
    %583 = vmatprep.subr.mxu0 0.0
    %584 = vmatpush1.xpose.msra.mxu0 0.0
    %585 = vmatprep.subr.mxu0 0.0
    %586 = vmatpush1.xpose.msra.mxu0 0.0
    %587 = vmatprep.subr.mxu0 0.0
    %588 = vmatpush1.xpose.msra.mxu0 0.0
    %589 = vmatprep.subr.mxu0 0.0
    %590 = vmatpush1.xpose.msra.mxu0 0.0
    %591 = vmatprep.subr.mxu0 0.0
    %592 = vmatpush1.xpose.msra.mxu0 0.0
    %593 = vmatprep.subr.mxu0 0.0
    %594 = vmatpush1.xpose.msra.mxu0 0.0
    %595 = vmatprep.subr.mxu0 0.0
    %596 = vmatpush1.xpose.msra.mxu0 0.0
    %597 = vmatprep.subr.mxu0 0.0
    %598 = vmatpush1.xpose.msra.mxu0 0.0
    %599 = vmatprep.subr.mxu0 0.0
    %600 = vmatpush1.xpose.msra.mxu0 0.0
    %601 = vmatprep.mubr.f32.mxu0 0.0
    %602 = vmatmul.mubr.f32.gmra.mrb[0].mxu0 %v529
    %v603 = vpop.f32.mrb[0].mxu0
    %v604 = vadd.f32 %v25, %v603
    %v605 = vpop.f32.mrb[0].mxu0
    %606 = vmatprep.mubr.f32.mxu0 0.0
    %607 = vmatmul.mubr.f32.gmra.mrb[0].mxu0 %v531
    %v608 = vpop.f32.mrb[0].mxu0
    %v609 = vadd.f32 %v26, %v608
    %v610 = vpop.f32.mrb[0].mxu0
    %611 = vdwg.mxu0
    %v612 = vsel %vm410, %v604, -inf
    %613 = vmax.xlane.f32.xlu0 %v612
    %v614 = vpop.xlane.xlu0 %613
    %v615 = vsel %vm410, %v609, -inf
    %616 = vmax.xlane.f32.xlu0 %v615
    %v617 = vpop.xlane.xlu0 %616
    %v618 = vsub.f32 %v604, %v614
    %v619 = vsub.f32 %v609, %v617
    %v620 = vmul.f32 %v618, 1.442695
    %v621 = vpow.pop %v620
    %v622 = vmul.f32 %v619, 1.442695
    %v623 = vpow.pop %v622
    %v624 = vsel %vm410, %v621, 0.0
    %625 = vadd.xlane.f32.xlu0 %v624
    %v626 = vpop.xlane.xlu0 %625
    %v627 = vsel %vm410, %v623, 0.0
    %628 = vadd.xlane.f32.xlu0 %v627
    %v629 = vpop.xlane.xlu0 %628
    %v630 = vrcp.pop %v626
    %v631 = vrcp.pop %v629
    %v632 = vmul.f32 %v626, %v630
    %v633 = vmul.f32 %v629, %v631
    %v634 = vsub.f32 2.0, %v632
    %v635 = vsub.f32 2.0, %v633
    %v636 = vmul.f32 %v630, %v634
    %v637 = vmul.f32 %v631, %v635
    %v638 = vmul.f32 %v621, %v636
    %v639 = vmul.f32 %v623, %v637
    %642 = vrot.lane.b32.xlu0 %v314, 120
    %v643 = vpop.permute.xlu0 %642
    %644 = vrot.lane.b32.xlu0 %v319, 120
    %v645 = vpop.permute.xlu0 %644
    %v649 = vsel %vm410, %v638, 0
    %v652 = vsel %vm410, %v639, 0
    %654 = vmatprep.subr.mxu0 0.0
    %655 = vmatpush1.msra.mxu0 %v643
    %656 = vmatprep.subr.mxu0 0.0
    %657 = vmatpush1.msra.mxu0 %v645
    %658 = vmatprep.subr.mxu0 0.0
    %659 = vmatpush1.msra.mxu0 0.0
    %660 = vmatprep.subr.mxu0 0.0
    %661 = vmatpush1.msra.mxu0 0.0
    %662 = vmatprep.subr.mxu0 0.0
    %663 = vmatpush1.msra.mxu0 0.0
    %664 = vmatprep.subr.mxu0 0.0
    %665 = vmatpush1.msra.mxu0 0.0
    %666 = vmatprep.subr.mxu0 0.0
    %667 = vmatpush1.msra.mxu0 0.0
    %668 = vmatprep.subr.mxu0 0.0
    %669 = vmatpush1.msra.mxu0 0.0
    %670 = vmatprep.subr.mxu0 0.0
    %671 = vmatpush1.msra.mxu0 0.0
    %672 = vmatprep.subr.mxu0 0.0
    %673 = vmatpush1.msra.mxu0 0.0
    %674 = vmatprep.subr.mxu0 0.0
    %675 = vmatpush1.msra.mxu0 0.0
    %676 = vmatprep.subr.mxu0 0.0
    %677 = vmatpush1.msra.mxu0 0.0
    %678 = vmatprep.subr.mxu0 0.0
    %679 = vmatpush1.msra.mxu0 0.0
    %680 = vmatprep.subr.mxu0 0.0
    %681 = vmatpush1.msra.mxu0 0.0
    %682 = vmatprep.subr.mxu0 0.0
    %683 = vmatpush1.msra.mxu0 0.0
    %684 = vmatprep.subr.mxu0 0.0
    %685 = vmatpush1.msra.mxu0 0.0
    %686 = vmatprep.subr.mxu0 0.0
    %687 = vmatpush1.msra.mxu0 0.0
    %688 = vmatprep.subr.mxu0 0.0
    %689 = vmatpush1.msra.mxu0 0.0
    %690 = vmatprep.subr.mxu0 0.0
    %691 = vmatpush1.msra.mxu0 0.0
    %692 = vmatprep.subr.mxu0 0.0
    %693 = vmatpush1.msra.mxu0 0.0
    %694 = vmatprep.subr.mxu0 0.0
    %695 = vmatpush1.msra.mxu0 0.0
    %696 = vmatprep.subr.mxu0 0.0
    %697 = vmatpush1.msra.mxu0 0.0
    %698 = vmatprep.subr.mxu0 0.0
    %699 = vmatpush1.msra.mxu0 0.0
    %700 = vmatprep.subr.mxu0 0.0
    %701 = vmatpush1.msra.mxu0 0.0
    %702 = vmatprep.subr.mxu0 0.0
    %703 = vmatpush1.msra.mxu0 0.0
    %704 = vmatprep.subr.mxu0 0.0
    %705 = vmatpush1.msra.mxu0 0.0
    %706 = vmatprep.subr.mxu0 0.0
    %707 = vmatpush1.msra.mxu0 0.0
    %708 = vmatprep.subr.mxu0 0.0
    %709 = vmatpush1.msra.mxu0 0.0
    %710 = vmatprep.subr.mxu0 0.0
    %711 = vmatpush1.msra.mxu0 0.0
    %712 = vmatprep.subr.mxu0 0.0
    %713 = vmatpush1.msra.mxu0 0.0
    %714 = vmatprep.subr.mxu0 0.0
    %715 = vmatpush1.msra.mxu0 0.0
    %716 = vmatprep.subr.mxu0 0.0
    %717 = vmatpush1.msra.mxu0 0.0
    %718 = vmatprep.mubr.f32.mxu0 0.0
    %719 = vmatmul.mubr.f32.gmra.mrb[0].mxu0 %v649
    %v720 = vpop.f32.mrb[0].mxu0
    %v721 = vadd.f32 0.0, %v720
    %v722 = vpop.f32.mrb[0].mxu0
    %723 = vmatprep.mubr.f32.mxu0 0.0
    %724 = vmatmul.mubr.f32.gmra.mrb[0].mxu0 %v652
    %v725 = vpop.f32.mrb[0].mxu0
    %v726 = vadd.f32 0.0, %v725
    %v727 = vpop.f32.mrb[0].mxu0
    %728 = vdwg.mxu0
    %v729 = vld [vmem:[%s2 + $0x68] sm:$0xff]
    %v731 = vsel %vm322, %v721, 0
    %v734 = vsel %vm322, %v726, 0
    %736 = vmatprep.subr.mxu0 0.0
    %737 = vmatpush1.msra.mxu0 %v729
    %738 = vmatprep.subr.mxu0 0.0
    %739 = vmatpush1.msra.mxu0 0.0
    %740 = vmatprep.subr.mxu0 0.0
    %741 = vmatpush1.msra.mxu0 0.0
    %742 = vmatprep.subr.mxu0 0.0
    %743 = vmatpush1.msra.mxu0 0.0
    %744 = vmatprep.subr.mxu0 0.0
    %745 = vmatpush1.msra.mxu0 0.0
    %746 = vmatprep.subr.mxu0 0.0
    %747 = vmatpush1.msra.mxu0 0.0
    %748 = vmatprep.subr.mxu0 0.0
    %749 = vmatpush1.msra.mxu0 0.0
    %750 = vmatprep.subr.mxu0 0.0
    %751 = vmatpush1.msra.mxu0 0.0
    %752 = vmatprep.subr.mxu0 0.0
    %753 = vmatpush1.msra.mxu0 0.0
    %754 = vmatprep.subr.mxu0 0.0
    %755 = vmatpush1.msra.mxu0 0.0
    %756 = vmatprep.subr.mxu0 0.0
    %757 = vmatpush1.msra.mxu0 0.0
    %758 = vmatprep.subr.mxu0 0.0
    %759 = vmatpush1.msra.mxu0 0.0
    %760 = vmatprep.subr.mxu0 0.0
    %761 = vmatpush1.msra.mxu0 0.0
    %762 = vmatprep.subr.mxu0 0.0
    %763 = vmatpush1.msra.mxu0 0.0
    %764 = vmatprep.subr.mxu0 0.0
    %765 = vmatpush1.msra.mxu0 0.0
    %766 = vmatprep.subr.mxu0 0.0
    %767 = vmatpush1.msra.mxu0 0.0
    %768 = vmatprep.subr.mxu0 0.0
    %769 = vmatpush1.msra.mxu0 0.0
    %770 = vmatprep.subr.mxu0 0.0
    %771 = vmatpush1.msra.mxu0 0.0
    %772 = vmatprep.subr.mxu0 0.0
    %773 = vmatpush1.msra.mxu0 0.0
    %774 = vmatprep.subr.mxu0 0.0
    %775 = vmatpush1.msra.mxu0 0.0
    %776 = vmatprep.subr.mxu0 0.0
    %777 = vmatpush1.msra.mxu0 0.0
    %778 = vmatprep.subr.mxu0 0.0
    %779 = vmatpush1.msra.mxu0 0.0
    %780 = vmatprep.subr.mxu0 0.0
    %781 = vmatpush1.msra.mxu0 0.0
    %782 = vmatprep.subr.mxu0 0.0
    %783 = vmatpush1.msra.mxu0 0.0
    %784 = vmatprep.subr.mxu0 0.0
    %785 = vmatpush1.msra.mxu0 0.0
    %786 = vmatprep.subr.mxu0 0.0
    %787 = vmatpush1.msra.mxu0 0.0
    %788 = vmatprep.subr.mxu0 0.0
    %789 = vmatpush1.msra.mxu0 0.0
    %790 = vmatprep.subr.mxu0 0.0
    %791 = vmatpush1.msra.mxu0 0.0
    %792 = vmatprep.subr.mxu0 0.0
    %793 = vmatpush1.msra.mxu0 0.0
    %794 = vmatprep.subr.mxu0 0.0
    %795 = vmatpush1.msra.mxu0 0.0
    %796 = vmatprep.subr.mxu0 0.0
    %797 = vmatpush1.msra.mxu0 0.0
    %798 = vmatprep.subr.mxu0 0.0
    %799 = vmatpush1.msra.mxu0 0.0
    %800 = vmatprep.mubr.f32.mxu0 0.0
    %801 = vmatmul.mubr.f32.gmra.mrb[0].mxu0 %v731
    %v802 = vpop.f32.mrb[0].mxu0
    %v803 = vadd.f32 0.0, %v802
    %v804 = vpop.f32.mrb[0].mxu0
    %805 = vmatprep.mubr.f32.mxu0 0.0
    %806 = vmatmul.mubr.f32.gmra.mrb[0].mxu0 %v734
    %v807 = vpop.f32.mrb[0].mxu0
    %v808 = vadd.f32 0.0, %v807
    %v809 = vpop.f32.mrb[0].mxu0
    %810 = vdwg.mxu0
    %v812 = vsel %vm322, %v512, 0
    %v815 = vsel %vm322, %v517, 0
    %817 = vmatprep.subr.mxu0 0.0
    %818 = vmatpush1.msra.mxu0 %v520
    %819 = vmatprep.subr.mxu0 0.0
    %820 = vmatpush1.msra.mxu0 0.0
    %821 = vmatprep.subr.mxu0 0.0
    %822 = vmatpush1.msra.mxu0 0.0
    %823 = vmatprep.subr.mxu0 0.0
    %824 = vmatpush1.msra.mxu0 0.0
    %825 = vmatprep.subr.mxu0 0.0
    %826 = vmatpush1.msra.mxu0 0.0
    %827 = vmatprep.subr.mxu0 0.0
    %828 = vmatpush1.msra.mxu0 0.0
    %829 = vmatprep.subr.mxu0 0.0
    %830 = vmatpush1.msra.mxu0 0.0
    %831 = vmatprep.subr.mxu0 0.0
    %832 = vmatpush1.msra.mxu0 0.0
    %833 = vmatprep.subr.mxu0 0.0
    %834 = vmatpush1.msra.mxu0 0.0
    %835 = vmatprep.subr.mxu0 0.0
    %836 = vmatpush1.msra.mxu0 0.0
    %837 = vmatprep.subr.mxu0 0.0
    %838 = vmatpush1.msra.mxu0 0.0
    %839 = vmatprep.subr.mxu0 0.0
    %840 = vmatpush1.msra.mxu0 0.0
    %841 = vmatprep.subr.mxu0 0.0
    %842 = vmatpush1.msra.mxu0 0.0
    %843 = vmatprep.subr.mxu0 0.0
    %844 = vmatpush1.msra.mxu0 0.0
    %845 = vmatprep.subr.mxu0 0.0
    %846 = vmatpush1.msra.mxu0 0.0
    %847 = vmatprep.subr.mxu0 0.0
    %848 = vmatpush1.msra.mxu0 0.0
    %849 = vmatprep.subr.mxu0 0.0
    %850 = vmatpush1.msra.mxu0 0.0
    %851 = vmatprep.subr.mxu0 0.0
    %852 = vmatpush1.msra.mxu0 0.0
    %853 = vmatprep.subr.mxu0 0.0
    %854 = vmatpush1.msra.mxu0 0.0
    %855 = vmatprep.subr.mxu0 0.0
    %856 = vmatpush1.msra.mxu0 0.0
    %857 = vmatprep.subr.mxu0 0.0
    %858 = vmatpush1.msra.mxu0 0.0
    %859 = vmatprep.subr.mxu0 0.0
    %860 = vmatpush1.msra.mxu0 0.0
    %861 = vmatprep.subr.mxu0 0.0
    %862 = vmatpush1.msra.mxu0 0.0
    %863 = vmatprep.subr.mxu0 0.0
    %864 = vmatpush1.msra.mxu0 0.0
    %865 = vmatprep.subr.mxu0 0.0
    %866 = vmatpush1.msra.mxu0 0.0
    %867 = vmatprep.subr.mxu0 0.0
    %868 = vmatpush1.msra.mxu0 0.0
    %869 = vmatprep.subr.mxu0 0.0
    %870 = vmatpush1.msra.mxu0 0.0
    %871 = vmatprep.subr.mxu0 0.0
    %872 = vmatpush1.msra.mxu0 0.0
    %873 = vmatprep.subr.mxu0 0.0
    %874 = vmatpush1.msra.mxu0 0.0
    %875 = vmatprep.subr.mxu0 0.0
    %876 = vmatpush1.msra.mxu0 0.0
    %877 = vmatprep.subr.mxu0 0.0
    %878 = vmatpush1.msra.mxu0 0.0
    %879 = vmatprep.subr.mxu0 0.0
    %880 = vmatpush1.msra.mxu0 0.0
    %881 = vmatprep.mubr.f32.mxu0 0.0
    %882 = vmatmul.mubr.f32.gmra.mrb[0].mxu0 %v812
    %v883 = vpop.f32.mrb[0].mxu0
    %v884 = vadd.f32 %v803, %v883
    %v885 = vpop.f32.mrb[0].mxu0
    %886 = vmatprep.mubr.f32.mxu0 0.0
    %887 = vmatmul.mubr.f32.gmra.mrb[0].mxu0 %v815
    %v888 = vpop.f32.mrb[0].mxu0
    %v889 = vadd.f32 %v808, %v888
    %v890 = vpop.f32.mrb[0].mxu0
    %891 = vdwg.mxu0
    %892 = vrot.lane.b32.xlu0 %v148, 112
    %v893 = vpop.permute.xlu0 %892
    %894 = vrot.lane.b32.xlu0 %v153, 112
    %v895 = vpop.permute.xlu0 %894
    %896 = vrot.lane.b32.xlu0 %v231, 112
    %v897 = vpop.permute.xlu0 %896
    %898 = vrot.lane.b32.xlu0 %v236, 112
    %v899 = vpop.permute.xlu0 %898
    %v900 = vsel %vm322, %v893, 0
    %v902 = vsel %vm322, %v895, 0
    %v904 = vsel %vm322, %v897, 0
    %v906 = vsel %vm322, %v899, 0
    %908 = vmatprep.subr.mxu0 0.0
    %909 = vmatpush1.xpose.msra.mxu0 %v904
    %910 = vmatprep.subr.mxu0 0.0
    %911 = vmatpush1.xpose.msra.mxu0 %v906
    %912 = vmatprep.subr.mxu0 0.0
    %913 = vmatpush1.xpose.msra.mxu0 0.0
    %914 = vmatprep.subr.mxu0 0.0
    %915 = vmatpush1.xpose.msra.mxu0 0.0
    %916 = vmatprep.subr.mxu0 0.0
    %917 = vmatpush1.xpose.msra.mxu0 0.0
    %918 = vmatprep.subr.mxu0 0.0
    %919 = vmatpush1.xpose.msra.mxu0 0.0
    %920 = vmatprep.subr.mxu0 0.0
    %921 = vmatpush1.xpose.msra.mxu0 0.0
    %922 = vmatprep.subr.mxu0 0.0
    %923 = vmatpush1.xpose.msra.mxu0 0.0
    %924 = vmatprep.subr.mxu0 0.0
    %925 = vmatpush1.xpose.msra.mxu0 0.0
    %926 = vmatprep.subr.mxu0 0.0
    %927 = vmatpush1.xpose.msra.mxu0 0.0
    %928 = vmatprep.subr.mxu0 0.0
    %929 = vmatpush1.xpose.msra.mxu0 0.0
    %930 = vmatprep.subr.mxu0 0.0
    %931 = vmatpush1.xpose.msra.mxu0 0.0
    %932 = vmatprep.subr.mxu0 0.0
    %933 = vmatpush1.xpose.msra.mxu0 0.0
    %934 = vmatprep.subr.mxu0 0.0
    %935 = vmatpush1.xpose.msra.mxu0 0.0
    %936 = vmatprep.subr.mxu0 0.0
    %937 = vmatpush1.xpose.msra.mxu0 0.0
    %938 = vmatprep.subr.mxu0 0.0
    %939 = vmatpush1.xpose.msra.mxu0 0.0
    %940 = vmatprep.subr.mxu0 0.0
    %941 = vmatpush1.xpose.msra.mxu0 0.0
    %942 = vmatprep.subr.mxu0 0.0
    %943 = vmatpush1.xpose.msra.mxu0 0.0
    %944 = vmatprep.subr.mxu0 0.0
    %945 = vmatpush1.xpose.msra.mxu0 0.0
    %946 = vmatprep.subr.mxu0 0.0
    %947 = vmatpush1.xpose.msra.mxu0 0.0
    %948 = vmatprep.subr.mxu0 0.0
    %949 = vmatpush1.xpose.msra.mxu0 0.0
    %950 = vmatprep.subr.mxu0 0.0
    %951 = vmatpush1.xpose.msra.mxu0 0.0
    %952 = vmatprep.subr.mxu0 0.0
    %953 = vmatpush1.xpose.msra.mxu0 0.0
    %954 = vmatprep.subr.mxu0 0.0
    %955 = vmatpush1.xpose.msra.mxu0 0.0
    %956 = vmatprep.subr.mxu0 0.0
    %957 = vmatpush1.xpose.msra.mxu0 0.0
    %958 = vmatprep.subr.mxu0 0.0
    %959 = vmatpush1.xpose.msra.mxu0 0.0
    %960 = vmatprep.subr.mxu0 0.0
    %961 = vmatpush1.xpose.msra.mxu0 0.0
    %962 = vmatprep.subr.mxu0 0.0
    %963 = vmatpush1.xpose.msra.mxu0 0.0
    %964 = vmatprep.subr.mxu0 0.0
    %965 = vmatpush1.xpose.msra.mxu0 0.0
    %966 = vmatprep.subr.mxu0 0.0
    %967 = vmatpush1.xpose.msra.mxu0 0.0
    %968 = vmatprep.subr.mxu0 0.0
    %969 = vmatpush1.xpose.msra.mxu0 0.0
    %970 = vmatprep.subr.mxu0 0.0
    %971 = vmatpush1.xpose.msra.mxu0 0.0
    %972 = vmatprep.mubr.f32.mxu0 0.0
    %973 = vmatmul.mubr.f32.gmra.mrb[0].mxu0 %v900
    %v974 = vpop.f32.mrb[0].mxu0
    %v975 = vadd.f32 %v25, %v974
    %v976 = vpop.f32.mrb[0].mxu0
    %977 = vmatprep.mubr.f32.mxu0 0.0
    %978 = vmatmul.mubr.f32.gmra.mrb[0].mxu0 %v902
    %v979 = vpop.f32.mrb[0].mxu0
    %v980 = vadd.f32 %v26, %v979
    %v981 = vpop.f32.mrb[0].mxu0
    %982 = vdwg.mxu0
    %v983 = vsel %vm410, %v975, -inf
    %984 = vmax.xlane.f32.xlu0 %v983
    %v985 = vpop.xlane.xlu0 %984
    %v986 = vsel %vm410, %v980, -inf
    %987 = vmax.xlane.f32.xlu0 %v986
    %v988 = vpop.xlane.xlu0 %987
    %v989 = vsub.f32 %v975, %v985
    %v990 = vsub.f32 %v980, %v988
    %v991 = vmul.f32 %v989, 1.442695
    %v992 = vpow.pop %v991
    %v993 = vmul.f32 %v990, 1.442695
    %v994 = vpow.pop %v993
    %v995 = vsel %vm410, %v992, 0.0
    %996 = vadd.xlane.f32.xlu0 %v995
    %v997 = vpop.xlane.xlu0 %996
    %v998 = vsel %vm410, %v994, 0.0
    %999 = vadd.xlane.f32.xlu0 %v998
    %v1000 = vpop.xlane.xlu0 %999
    %v1001 = vrcp.pop %v997
    %v1002 = vrcp.pop %v1000
    %v1003 = vmul.f32 %v997, %v1001
    %v1004 = vmul.f32 %v1000, %v1002
    %v1005 = vsub.f32 2.0, %v1003
    %v1006 = vsub.f32 2.0, %v1004
    %v1007 = vmul.f32 %v1001, %v1005
    %v1008 = vmul.f32 %v1002, %v1006
    %v1009 = vmul.f32 %v992, %v1007
    %v1010 = vmul.f32 %v994, %v1008
    %1011 = vrot.lane.b32.xlu0 %v314, 112
    %v1012 = vpop.permute.xlu0 %1011
    %1013 = vrot.lane.b32.xlu0 %v319, 112
    %v1014 = vpop.permute.xlu0 %1013
    %v1018 = vsel %vm410, %v1009, 0
    %v1021 = vsel %vm410, %v1010, 0
    %1023 = vmatprep.subr.mxu0 0.0
    %1024 = vmatpush1.msra.mxu0 %v1012
    %1025 = vmatprep.subr.mxu0 0.0
    %1026 = vmatpush1.msra.mxu0 %v1014
    %1027 = vmatprep.subr.mxu0 0.0
    %1028 = vmatpush1.msra.mxu0 0.0
    %1029 = vmatprep.subr.mxu0 0.0
    %1030 = vmatpush1.msra.mxu0 0.0
    %1031 = vmatprep.subr.mxu0 0.0
    %1032 = vmatpush1.msra.mxu0 0.0
    %1033 = vmatprep.subr.mxu0 0.0
    %1034 = vmatpush1.msra.mxu0 0.0
    %1035 = vmatprep.subr.mxu0 0.0
    %1036 = vmatpush1.msra.mxu0 0.0
    %1037 = vmatprep.subr.mxu0 0.0
    %1038 = vmatpush1.msra.mxu0 0.0
    %1039 = vmatprep.subr.mxu0 0.0
    %1040 = vmatpush1.msra.mxu0 0.0
    %1041 = vmatprep.subr.mxu0 0.0
    %1042 = vmatpush1.msra.mxu0 0.0
    %1043 = vmatprep.subr.mxu0 0.0
    %1044 = vmatpush1.msra.mxu0 0.0
    %1045 = vmatprep.subr.mxu0 0.0
    %1046 = vmatpush1.msra.mxu0 0.0
    %1047 = vmatprep.subr.mxu0 0.0
    %1048 = vmatpush1.msra.mxu0 0.0
    %1049 = vmatprep.subr.mxu0 0.0
    %1050 = vmatpush1.msra.mxu0 0.0
    %1051 = vmatprep.subr.mxu0 0.0
    %1052 = vmatpush1.msra.mxu0 0.0
    %1053 = vmatprep.subr.mxu0 0.0
    %1054 = vmatpush1.msra.mxu0 0.0
    %1055 = vmatprep.subr.mxu0 0.0
    %1056 = vmatpush1.msra.mxu0 0.0
    %1057 = vmatprep.subr.mxu0 0.0
    %1058 = vmatpush1.msra.mxu0 0.0
    %1059 = vmatprep.subr.mxu0 0.0
    %1060 = vmatpush1.msra.mxu0 0.0
    %1061 = vmatprep.subr.mxu0 0.0
    %1062 = vmatpush1.msra.mxu0 0.0
    %1063 = vmatprep.subr.mxu0 0.0
    %1064 = vmatpush1.msra.mxu0 0.0
    %1065 = vmatprep.subr.mxu0 0.0
    %1066 = vmatpush1.msra.mxu0 0.0
    %1067 = vmatprep.subr.mxu0 0.0
    %1068 = vmatpush1.msra.mxu0 0.0
    %1069 = vmatprep.subr.mxu0 0.0
    %1070 = vmatpush1.msra.mxu0 0.0
    %1071 = vmatprep.subr.mxu0 0.0
    %1072 = vmatpush1.msra.mxu0 0.0
    %1073 = vmatprep.subr.mxu0 0.0
    %1074 = vmatpush1.msra.mxu0 0.0
    %1075 = vmatprep.subr.mxu0 0.0
    %1076 = vmatpush1.msra.mxu0 0.0
    %1077 = vmatprep.subr.mxu0 0.0
    %1078 = vmatpush1.msra.mxu0 0.0
    %1079 = vmatprep.subr.mxu0 0.0
    %1080 = vmatpush1.msra.mxu0 0.0
    %1081 = vmatprep.subr.mxu0 0.0
    %1082 = vmatpush1.msra.mxu0 0.0
    %1083 = vmatprep.subr.mxu0 0.0
    %1084 = vmatpush1.msra.mxu0 0.0
    %1085 = vmatprep.subr.mxu0 0.0
    %1086 = vmatpush1.msra.mxu0 0.0
    %1087 = vmatprep.mubr.f32.mxu0 0.0
    %1088 = vmatmul.mubr.f32.gmra.mrb[0].mxu0 %v1018
    %v1089 = vpop.f32.mrb[0].mxu0
    %v1090 = vadd.f32 0.0, %v1089
    %v1091 = vpop.f32.mrb[0].mxu0
    %1092 = vmatprep.mubr.f32.mxu0 0.0
    %1093 = vmatmul.mubr.f32.gmra.mrb[0].mxu0 %v1021
    %v1094 = vpop.f32.mrb[0].mxu0
    %v1095 = vadd.f32 0.0, %v1094
    %v1096 = vpop.f32.mrb[0].mxu0
    %1097 = vdwg.mxu0
    %v1098 = vld [vmem:[%s2 + $0x70] sm:$0xff]
    %v1100 = vsel %vm322, %v1090, 0
    %v1103 = vsel %vm322, %v1095, 0
    %1105 = vmatprep.subr.mxu0 0.0
    %1106 = vmatpush1.msra.mxu0 %v1098
    %1107 = vmatprep.subr.mxu0 0.0
    %1108 = vmatpush1.msra.mxu0 0.0
    %1109 = vmatprep.subr.mxu0 0.0
    %1110 = vmatpush1.msra.mxu0 0.0
    %1111 = vmatprep.subr.mxu0 0.0
    %1112 = vmatpush1.msra.mxu0 0.0
    %1113 = vmatprep.subr.mxu0 0.0
    %1114 = vmatpush1.msra.mxu0 0.0
    %1115 = vmatprep.subr.mxu0 0.0
    %1116 = vmatpush1.msra.mxu0 0.0
    %1117 = vmatprep.subr.mxu0 0.0
    %1118 = vmatpush1.msra.mxu0 0.0
    %1119 = vmatprep.subr.mxu0 0.0
    %1120 = vmatpush1.msra.mxu0 0.0
    %1121 = vmatprep.subr.mxu0 0.0
    %1122 = vmatpush1.msra.mxu0 0.0
    %1123 = vmatprep.subr.mxu0 0.0
    %1124 = vmatpush1.msra.mxu0 0.0
    %1125 = vmatprep.subr.mxu0 0.0
    %1126 = vmatpush1.msra.mxu0 0.0
    %1127 = vmatprep.subr.mxu0 0.0
    %1128 = vmatpush1.msra.mxu0 0.0
    %1129 = vmatprep.subr.mxu0 0.0
    %1130 = vmatpush1.msra.mxu0 0.0
    %1131 = vmatprep.subr.mxu0 0.0
    %1132 = vmatpush1.msra.mxu0 0.0
    %1133 = vmatprep.subr.mxu0 0.0
    %1134 = vmatpush1.msra.mxu0 0.0
    %1135 = vmatprep.subr.mxu0 0.0
    %1136 = vmatpush1.msra.mxu0 0.0
    %1137 = vmatprep.subr.mxu0 0.0
    %1138 = vmatpush1.msra.mxu0 0.0
    %1139 = vmatprep.subr.mxu0 0.0
    %1140 = vmatpush1.msra.mxu0 0.0
    %1141 = vmatprep.subr.mxu0 0.0
    %1142 = vmatpush1.msra.mxu0 0.0
    %1143 = vmatprep.subr.mxu0 0.0
    %1144 = vmatpush1.msra.mxu0 0.0
    %1145 = vmatprep.subr.mxu0 0.0
    %1146 = vmatpush1.msra.mxu0 0.0
    %1147 = vmatprep.subr.mxu0 0.0
    %1148 = vmatpush1.msra.mxu0 0.0
    %1149 = vmatprep.subr.mxu0 0.0
    %1150 = vmatpush1.msra.mxu0 0.0
    %1151 = vmatprep.subr.mxu0 0.0
    %1152 = vmatpush1.msra.mxu0 0.0
    %1153 = vmatprep.subr.mxu0 0.0
    %1154 = vmatpush1.msra.mxu0 0.0
    %1155 = vmatprep.subr.mxu0 0.0
    %1156 = vmatpush1.msra.mxu0 0.0
    %1157 = vmatprep.subr.mxu0 0.0
    %1158 = vmatpush1.msra.mxu0 0.0
    %1159 = vmatprep.subr.mxu0 0.0
    %1160 = vmatpush1.msra.mxu0 0.0
    %1161 = vmatprep.subr.mxu0 0.0
    %1162 = vmatpush1.msra.mxu0 0.0
    %1163 = vmatprep.subr.mxu0 0.0
    %1164 = vmatpush1.msra.mxu0 0.0
    %1165 = vmatprep.subr.mxu0 0.0
    %1166 = vmatpush1.msra.mxu0 0.0
    %1167 = vmatprep.subr.mxu0 0.0
    %1168 = vmatpush1.msra.mxu0 0.0
    %1169 = vmatprep.mubr.f32.mxu0 0.0
    %1170 = vmatmul.mubr.f32.gmra.mrb[0].mxu0 %v1100
    %v1171 = vpop.f32.mrb[0].mxu0
    %v1172 = vadd.f32 0.0, %v1171
    %v1173 = vpop.f32.mrb[0].mxu0
    %1174 = vmatprep.mubr.f32.mxu0 0.0
    %1175 = vmatmul.mubr.f32.gmra.mrb[0].mxu0 %v1103
    %v1176 = vpop.f32.mrb[0].mxu0
    %v1177 = vadd.f32 0.0, %v1176
    %v1178 = vpop.f32.mrb[0].mxu0
    %1179 = vdwg.mxu0
    %v1180 = vadd.f32 %v884, %v1172
    %v1181 = vadd.f32 %v889, %v1177
    %1182 = vrot.lane.b32.xlu0 %v148, 104
    %v1183 = vpop.permute.xlu0 %1182
    %1184 = vrot.lane.b32.xlu0 %v153, 104
    %v1185 = vpop.permute.xlu0 %1184
    %1186 = vrot.lane.b32.xlu0 %v231, 104
    %v1187 = vpop.permute.xlu0 %1186
    %1188 = vrot.lane.b32.xlu0 %v236, 104
    %v1189 = vpop.permute.xlu0 %1188
    %v1190 = vsel %vm322, %v1183, 0
    %v1192 = vsel %vm322, %v1185, 0
    %v1194 = vsel %vm322, %v1187, 0
    %v1196 = vsel %vm322, %v1189, 0
    %1198 = vmatprep.subr.mxu0 0.0
    %1199 = vmatpush1.xpose.msra.mxu0 %v1194
    %1200 = vmatprep.subr.mxu0 0.0
    %1201 = vmatpush1.xpose.msra.mxu0 %v1196
    %1202 = vmatprep.subr.mxu0 0.0
    %1203 = vmatpush1.xpose.msra.mxu0 0.0
    %1204 = vmatprep.subr.mxu0 0.0
    %1205 = vmatpush1.xpose.msra.mxu0 0.0
    %1206 = vmatprep.subr.mxu0 0.0
    %1207 = vmatpush1.xpose.msra.mxu0 0.0
    %1208 = vmatprep.subr.mxu0 0.0
    %1209 = vmatpush1.xpose.msra.mxu0 0.0
    %1210 = vmatprep.subr.mxu0 0.0
    %1211 = vmatpush1.xpose.msra.mxu0 0.0
    %1212 = vmatprep.subr.mxu0 0.0
    %1213 = vmatpush1.xpose.msra.mxu0 0.0
    %1214 = vmatprep.subr.mxu0 0.0
    %1215 = vmatpush1.xpose.msra.mxu0 0.0
    %1216 = vmatprep.subr.mxu0 0.0
    %1217 = vmatpush1.xpose.msra.mxu0 0.0
    %1218 = vmatprep.subr.mxu0 0.0
    %1219 = vmatpush1.xpose.msra.mxu0 0.0
    %1220 = vmatprep.subr.mxu0 0.0
    %1221 = vmatpush1.xpose.msra.mxu0 0.0
    %1222 = vmatprep.subr.mxu0 0.0
    %1223 = vmatpush1.xpose.msra.mxu0 0.0
    %1224 = vmatprep.subr.mxu0 0.0
    %1225 = vmatpush1.xpose.msra.mxu0 0.0
    %1226 = vmatprep.subr.mxu0 0.0
    %1227 = vmatpush1.xpose.msra.mxu0 0.0
    %1228 = vmatprep.subr.mxu0 0.0
    %1229 = vmatpush1.xpose.msra.mxu0 0.0
    %1230 = vmatprep.subr.mxu0 0.0
    %1231 = vmatpush1.xpose.msra.mxu0 0.0
    %1232 = vmatprep.subr.mxu0 0.0
    %1233 = vmatpush1.xpose.msra.mxu0 0.0
    %1234 = vmatprep.subr.mxu0 0.0
    %1235 = vmatpush1.xpose.msra.mxu0 0.0
    %1236 = vmatprep.subr.mxu0 0.0
    %1237 = vmatpush1.xpose.msra.mxu0 0.0
    %1238 = vmatprep.subr.mxu0 0.0
    %1239 = vmatpush1.xpose.msra.mxu0 0.0
    %1240 = vmatprep.subr.mxu0 0.0
    %1241 = vmatpush1.xpose.msra.mxu0 0.0
    %1242 = vmatprep.subr.mxu0 0.0
    %1243 = vmatpush1.xpose.msra.mxu0 0.0
    %1244 = vmatprep.subr.mxu0 0.0
    %1245 = vmatpush1.xpose.msra.mxu0 0.0
    %1246 = vmatprep.subr.mxu0 0.0
    %1247 = vmatpush1.xpose.msra.mxu0 0.0
    %1248 = vmatprep.subr.mxu0 0.0
    %1249 = vmatpush1.xpose.msra.mxu0 0.0
    %1250 = vmatprep.subr.mxu0 0.0
    %1251 = vmatpush1.xpose.msra.mxu0 0.0
    %1252 = vmatprep.subr.mxu0 0.0
    %1253 = vmatpush1.xpose.msra.mxu0 0.0
    %1254 = vmatprep.subr.mxu0 0.0
    %1255 = vmatpush1.xpose.msra.mxu0 0.0
    %1256 = vmatprep.subr.mxu0 0.0
    %1257 = vmatpush1.xpose.msra.mxu0 0.0
    %1258 = vmatprep.subr.mxu0 0.0
    %1259 = vmatpush1.xpose.msra.mxu0 0.0
    %1260 = vmatprep.subr.mxu0 0.0
    %1261 = vmatpush1.xpose.msra.mxu0 0.0
    %1262 = vmatprep.mubr.f32.mxu0 0.0
    %1263 = vmatmul.mubr.f32.gmra.mrb[0].mxu0 %v1190
    %v1264 = vpop.f32.mrb[0].mxu0
    %v1265 = vadd.f32 %v25, %v1264
    %v1266 = vpop.f32.mrb[0].mxu0
    %1267 = vmatprep.mubr.f32.mxu0 0.0
    %1268 = vmatmul.mubr.f32.gmra.mrb[0].mxu0 %v1192
    %v1269 = vpop.f32.mrb[0].mxu0
    %v1270 = vadd.f32 %v26, %v1269
    %v1271 = vpop.f32.mrb[0].mxu0
    %1272 = vdwg.mxu0
    %v1273 = vsel %vm410, %v1265, -inf
    %1274 = vmax.xlane.f32.xlu0 %v1273
    %v1275 = vpop.xlane.xlu0 %1274
    %v1276 = vsel %vm410, %v1270, -inf
    %1277 = vmax.xlane.f32.xlu0 %v1276
    %v1278 = vpop.xlane.xlu0 %1277
    %v1279 = vsub.f32 %v1265, %v1275
    %v1280 = vsub.f32 %v1270, %v1278
    %v1281 = vmul.f32 %v1279, 1.442695
    %v1282 = vpow.pop %v1281
    %v1283 = vmul.f32 %v1280, 1.442695
    %v1284 = vpow.pop %v1283
    %v1285 = vsel %vm410, %v1282, 0.0
    %1286 = vadd.xlane.f32.xlu0 %v1285
    %v1287 = vpop.xlane.xlu0 %1286
    %v1288 = vsel %vm410, %v1284, 0.0
    %1289 = vadd.xlane.f32.xlu0 %v1288
    %v1290 = vpop.xlane.xlu0 %1289
    %v1291 = vrcp.pop %v1287
    %v1292 = vrcp.pop %v1290
    %v1293 = vmul.f32 %v1287, %v1291
    %v1294 = vmul.f32 %v1290, %v1292
    %v1295 = vsub.f32 2.0, %v1293
    %v1296 = vsub.f32 2.0, %v1294
    %v1297 = vmul.f32 %v1291, %v1295
    %v1298 = vmul.f32 %v1292, %v1296
    %v1299 = vmul.f32 %v1282, %v1297
    %v1300 = vmul.f32 %v1284, %v1298
    %1301 = vrot.lane.b32.xlu0 %v314, 104
    %v1302 = vpop.permute.xlu0 %1301
    %1303 = vrot.lane.b32.xlu0 %v319, 104
    %v1304 = vpop.permute.xlu0 %1303
    %v1308 = vsel %vm410, %v1299, 0
    %v1311 = vsel %vm410, %v1300, 0
    %1313 = vmatprep.subr.mxu0 0.0
    %1314 = vmatpush1.msra.mxu0 %v1302
    %1315 = vmatprep.subr.mxu0 0.0
    %1316 = vmatpush1.msra.mxu0 %v1304
    %1317 = vmatprep.subr.mxu0 0.0
    %1318 = vmatpush1.msra.mxu0 0.0
    %1319 = vmatprep.subr.mxu0 0.0
    %1320 = vmatpush1.msra.mxu0 0.0
    %1321 = vmatprep.subr.mxu0 0.0
    %1322 = vmatpush1.msra.mxu0 0.0
    %1323 = vmatprep.subr.mxu0 0.0
    %1324 = vmatpush1.msra.mxu0 0.0
    %1325 = vmatprep.subr.mxu0 0.0
    %1326 = vmatpush1.msra.mxu0 0.0
    %1327 = vmatprep.subr.mxu0 0.0
    %1328 = vmatpush1.msra.mxu0 0.0
    %1329 = vmatprep.subr.mxu0 0.0
    %1330 = vmatpush1.msra.mxu0 0.0
    %1331 = vmatprep.subr.mxu0 0.0
    %1332 = vmatpush1.msra.mxu0 0.0
    %1333 = vmatprep.subr.mxu0 0.0
    %1334 = vmatpush1.msra.mxu0 0.0
    %1335 = vmatprep.subr.mxu0 0.0
    %1336 = vmatpush1.msra.mxu0 0.0
    %1337 = vmatprep.subr.mxu0 0.0
    %1338 = vmatpush1.msra.mxu0 0.0
    %1339 = vmatprep.subr.mxu0 0.0
    %1340 = vmatpush1.msra.mxu0 0.0
    %1341 = vmatprep.subr.mxu0 0.0
    %1342 = vmatpush1.msra.mxu0 0.0
    %1343 = vmatprep.subr.mxu0 0.0
    %1344 = vmatpush1.msra.mxu0 0.0
    %1345 = vmatprep.subr.mxu0 0.0
    %1346 = vmatpush1.msra.mxu0 0.0
    %1347 = vmatprep.subr.mxu0 0.0
    %1348 = vmatpush1.msra.mxu0 0.0
    %1349 = vmatprep.subr.mxu0 0.0
    %1350 = vmatpush1.msra.mxu0 0.0
    %1351 = vmatprep.subr.mxu0 0.0
    %1352 = vmatpush1.msra.mxu0 0.0
    %1353 = vmatprep.subr.mxu0 0.0
    %1354 = vmatpush1.msra.mxu0 0.0
    %1355 = vmatprep.subr.mxu0 0.0
    %1356 = vmatpush1.msra.mxu0 0.0
    %1357 = vmatprep.subr.mxu0 0.0
    %1358 = vmatpush1.msra.mxu0 0.0
    %1359 = vmatprep.subr.mxu0 0.0
    %1360 = vmatpush1.msra.mxu0 0.0
    %1361 = vmatprep.subr.mxu0 0.0
    %1362 = vmatpush1.msra.mxu0 0.0
    %1363 = vmatprep.subr.mxu0 0.0
    %1364 = vmatpush1.msra.mxu0 0.0
    %1365 = vmatprep.subr.mxu0 0.0
    %1366 = vmatpush1.msra.mxu0 0.0
    %1367 = vmatprep.subr.mxu0 0.0
    %1368 = vmatpush1.msra.mxu0 0.0
    %1369 = vmatprep.subr.mxu0 0.0
    %1370 = vmatpush1.msra.mxu0 0.0
    %1371 = vmatprep.subr.mxu0 0.0
    %1372 = vmatpush1.msra.mxu0 0.0
    %1373 = vmatprep.subr.mxu0 0.0
    %1374 = vmatpush1.msra.mxu0 0.0
    %1375 = vmatprep.subr.mxu0 0.0
    %1376 = vmatpush1.msra.mxu0 0.0
    %1377 = vmatprep.mubr.f32.mxu0 0.0
    %1378 = vmatmul.mubr.f32.gmra.mrb[0].mxu0 %v1308
    %v1379 = vpop.f32.mrb[0].mxu0
    %v1380 = vadd.f32 0.0, %v1379
    %v1381 = vpop.f32.mrb[0].mxu0
    %1382 = vmatprep.mubr.f32.mxu0 0.0
    %1383 = vmatmul.mubr.f32.gmra.mrb[0].mxu0 %v1311
    %v1384 = vpop.f32.mrb[0].mxu0
    %v1385 = vadd.f32 0.0, %v1384
    %v1386 = vpop.f32.mrb[0].mxu0
    %1387 = vdwg.mxu0
    %v1388 = vld [vmem:[%s2 + $0x78] sm:$0xff]
    %v1390 = vsel %vm322, %v1380, 0
    %v1393 = vsel %vm322, %v1385, 0
    %1395 = vmatprep.subr.mxu0 0.0
    %1396 = vmatpush1.msra.mxu0 %v1388
    %1397 = vmatprep.subr.mxu0 0.0
    %1398 = vmatpush1.msra.mxu0 0.0
    %1399 = vmatprep.subr.mxu0 0.0
    %1400 = vmatpush1.msra.mxu0 0.0
    %1401 = vmatprep.subr.mxu0 0.0
    %1402 = vmatpush1.msra.mxu0 0.0
    %1403 = vmatprep.subr.mxu0 0.0
    %1404 = vmatpush1.msra.mxu0 0.0
    %1405 = vmatprep.subr.mxu0 0.0
    %1406 = vmatpush1.msra.mxu0 0.0
    %1407 = vmatprep.subr.mxu0 0.0
    %1408 = vmatpush1.msra.mxu0 0.0
    %1409 = vmatprep.subr.mxu0 0.0
    %1410 = vmatpush1.msra.mxu0 0.0
    %1411 = vmatprep.subr.mxu0 0.0
    %1412 = vmatpush1.msra.mxu0 0.0
    %1413 = vmatprep.subr.mxu0 0.0
    %1414 = vmatpush1.msra.mxu0 0.0
    %1415 = vmatprep.subr.mxu0 0.0
    %1416 = vmatpush1.msra.mxu0 0.0
    %1417 = vmatprep.subr.mxu0 0.0
    %1418 = vmatpush1.msra.mxu0 0.0
    %1419 = vmatprep.subr.mxu0 0.0
    %1420 = vmatpush1.msra.mxu0 0.0
    %1421 = vmatprep.subr.mxu0 0.0
    %1422 = vmatpush1.msra.mxu0 0.0
    %1423 = vmatprep.subr.mxu0 0.0
    %1424 = vmatpush1.msra.mxu0 0.0
    %1425 = vmatprep.subr.mxu0 0.0
    %1426 = vmatpush1.msra.mxu0 0.0
    %1427 = vmatprep.subr.mxu0 0.0
    %1428 = vmatpush1.msra.mxu0 0.0
    %1429 = vmatprep.subr.mxu0 0.0
    %1430 = vmatpush1.msra.mxu0 0.0
    %1431 = vmatprep.subr.mxu0 0.0
    %1432 = vmatpush1.msra.mxu0 0.0
    %1433 = vmatprep.subr.mxu0 0.0
    %1434 = vmatpush1.msra.mxu0 0.0
    %1435 = vmatprep.subr.mxu0 0.0
    %1436 = vmatpush1.msra.mxu0 0.0
    %1437 = vmatprep.subr.mxu0 0.0
    %1438 = vmatpush1.msra.mxu0 0.0
    %1439 = vmatprep.subr.mxu0 0.0
    %1440 = vmatpush1.msra.mxu0 0.0
    %1441 = vmatprep.subr.mxu0 0.0
    %1442 = vmatpush1.msra.mxu0 0.0
    %1443 = vmatprep.subr.mxu0 0.0
    %1444 = vmatpush1.msra.mxu0 0.0
    %1445 = vmatprep.subr.mxu0 0.0
    %1446 = vmatpush1.msra.mxu0 0.0
    %1447 = vmatprep.subr.mxu0 0.0
    %1448 = vmatpush1.msra.mxu0 0.0
    %1449 = vmatprep.subr.mxu0 0.0
    %1450 = vmatpush1.msra.mxu0 0.0
    %1451 = vmatprep.subr.mxu0 0.0
    %1452 = vmatpush1.msra.mxu0 0.0
    %1453 = vmatprep.subr.mxu0 0.0
    %1454 = vmatpush1.msra.mxu0 0.0
    %1455 = vmatprep.subr.mxu0 0.0
    %1456 = vmatpush1.msra.mxu0 0.0
    %1457 = vmatprep.subr.mxu0 0.0
    %1458 = vmatpush1.msra.mxu0 0.0
    %1459 = vmatprep.mubr.f32.mxu0 0.0
    %1460 = vmatmul.mubr.f32.gmra.mrb[0].mxu0 %v1390
    %v1461 = vpop.f32.mrb[0].mxu0
    %v1462 = vadd.f32 0.0, %v1461
    %v1463 = vpop.f32.mrb[0].mxu0
    %1464 = vmatprep.mubr.f32.mxu0 0.0
    %1465 = vmatmul.mubr.f32.gmra.mrb[0].mxu0 %v1393
    %v1466 = vpop.f32.mrb[0].mxu0
    %v1467 = vadd.f32 0.0, %v1466
    %v1468 = vpop.f32.mrb[0].mxu0
    %1469 = vdwg.mxu0
    %v1470 = vadd.f32 %v1180, %v1462
    %v1471 = vadd.f32 %v1181, %v1467
    %v1472 = vadd.f32 %v21, %v1470
    %v1473 = vadd.f32 %v22, %v1471
    %v1474 = vlaneseq
    %v1475 = vshrl.u32 %v1474, 7
    %v1476 = vsub.s32 7, %v1475
    %v1477 = vrot.slane %v23, %v1476
    %v1478 = vadd.f32 %v1472, %v1477
    %v1479 = vadd.f32 %v1473, %v1477
    %v1480 = vsel %vm27, %v1478, 0.0
    %1481 = vadd.xlane.f32.xlu0 %v1480
    %v1482 = vpop.xlane.xlu0 %1481
    %v1483 = vsel %vm27, %v1479, 0.0
    %1484 = vadd.xlane.f32.xlu0 %v1483
    %v1485 = vpop.xlane.xlu0 %1484
    %v1486 = vmul.f32 %v1482, %v34
    %v1487 = vmul.f32 %v1485, %v34
    %v1488 = vsub.f32 %v1478, %v1486
    %v1489 = vsub.f32 %v1479, %v1487
    %v1490 = vmul.f32 %v1488, %v1488
    %v1491 = vmul.f32 %v1489, %v1489
    %v1492 = vsel %vm27, %v1490, 0.0
    %1493 = vadd.xlane.f32.xlu0 %v1492
    %v1494 = vpop.xlane.xlu0 %1493
    %v1495 = vsel %vm27, %v1491, 0.0
    %1496 = vadd.xlane.f32.xlu0 %v1495
    %v1497 = vpop.xlane.xlu0 %1496
    %v1498 = vmul.f32 %v1494, %v34
    %v1499 = vmul.f32 %v1497, %v34
    %v1500 = vadd.f32 %v1498, 1e-12
    %v1501 = vadd.f32 %v1499, 1e-12
    %v1502 = vrsqrt.pop %v1500
    %v1503 = vrsqrt.pop %v1501
    %v1504 = vmul.f32 %v1488, %v1502
    %v1505 = vmul.f32 %v1489, %v1503
    %v1506 = vlaneseq
    %v1507 = vshrl.u32 %v1506, 7
    %v1508 = vsub.s32 2, %v1507
    %v1509 = vrot.slane %v23, %v1508
    %v1510 = vmul.f32 %v1504, %v1509
    %v1511 = vmul.f32 %v1505, %v1509
    %v1512 = vlaneseq
    %v1513 = vshrl.u32 %v1512, 7
    %v1514 = vsub.s32 3, %v1513
    %v1515 = vrot.slane %v23, %v1514
    %v1516 = vadd.f32 %v1510, %v1515
    %v1517 = vadd.f32 %v1511, %v1515
    %v1518 = vld [vmem:[%s3] sm:$0xff]
    %v1519 = vld [vmem:[%s3 + $0x8] sm:$0xff]
    %v1520 = vld [vmem:[%s3 + $0x10] sm:$0xff]
    %v1521 = vld [vmem:[%s3 + $0x18] sm:$0xff]
    %v1522 = vlaneseq
    %v1523 = vshrl.u32 %v1522, 7
    %v1524 = vsub.s32 2, %v1523
    %v1525 = vrot.slane %v24, %v1524
    %v1527 = vsel %vm27, %v1516, 0
    %v1530 = vsel %vm27, %v1517, 0
    %1532 = vmatprep.subr.mxu0 0.0
    %1533 = vmatpush1.msra.mxu0 %v1518
    %1534 = vmatprep.subr.mxu0 0.0
    %1535 = vmatpush1.msra.mxu0 %v1519
    %1536 = vmatprep.subr.mxu0 0.0
    %1537 = vmatpush1.msra.mxu0 %v1520
    %1538 = vmatprep.subr.mxu0 0.0
    %1539 = vmatpush1.msra.mxu0 %v1521
    %1540 = vmatprep.subr.mxu0 0.0
    %1541 = vmatpush1.msra.mxu0 0.0
    %1542 = vmatprep.subr.mxu0 0.0
    %1543 = vmatpush1.msra.mxu0 0.0
    %1544 = vmatprep.subr.mxu0 0.0
    %1545 = vmatpush1.msra.mxu0 0.0
    %1546 = vmatprep.subr.mxu0 0.0
    %1547 = vmatpush1.msra.mxu0 0.0
    %1548 = vmatprep.subr.mxu0 0.0
    %1549 = vmatpush1.msra.mxu0 0.0
    %1550 = vmatprep.subr.mxu0 0.0
    %1551 = vmatpush1.msra.mxu0 0.0
    %1552 = vmatprep.subr.mxu0 0.0
    %1553 = vmatpush1.msra.mxu0 0.0
    %1554 = vmatprep.subr.mxu0 0.0
    %1555 = vmatpush1.msra.mxu0 0.0
    %1556 = vmatprep.subr.mxu0 0.0
    %1557 = vmatpush1.msra.mxu0 0.0
    %1558 = vmatprep.subr.mxu0 0.0
    %1559 = vmatpush1.msra.mxu0 0.0
    %1560 = vmatprep.subr.mxu0 0.0
    %1561 = vmatpush1.msra.mxu0 0.0
    %1562 = vmatprep.subr.mxu0 0.0
    %1563 = vmatpush1.msra.mxu0 0.0
    %1564 = vmatprep.subr.mxu0 0.0
    %1565 = vmatpush1.msra.mxu0 0.0
    %1566 = vmatprep.subr.mxu0 0.0
    %1567 = vmatpush1.msra.mxu0 0.0
    %1568 = vmatprep.subr.mxu0 0.0
    %1569 = vmatpush1.msra.mxu0 0.0
    %1570 = vmatprep.subr.mxu0 0.0
    %1571 = vmatpush1.msra.mxu0 0.0
    %1572 = vmatprep.subr.mxu0 0.0
    %1573 = vmatpush1.msra.mxu0 0.0
    %1574 = vmatprep.subr.mxu0 0.0
    %1575 = vmatpush1.msra.mxu0 0.0
    %1576 = vmatprep.subr.mxu0 0.0
    %1577 = vmatpush1.msra.mxu0 0.0
    %1578 = vmatprep.subr.mxu0 0.0
    %1579 = vmatpush1.msra.mxu0 0.0
    %1580 = vmatprep.subr.mxu0 0.0
    %1581 = vmatpush1.msra.mxu0 0.0
    %1582 = vmatprep.subr.mxu0 0.0
    %1583 = vmatpush1.msra.mxu0 0.0
    %1584 = vmatprep.subr.mxu0 0.0
    %1585 = vmatpush1.msra.mxu0 0.0
    %1586 = vmatprep.subr.mxu0 0.0
    %1587 = vmatpush1.msra.mxu0 0.0
    %1588 = vmatprep.subr.mxu0 0.0
    %1589 = vmatpush1.msra.mxu0 0.0
    %1590 = vmatprep.subr.mxu0 0.0
    %1591 = vmatpush1.msra.mxu0 0.0
    %1592 = vmatprep.subr.mxu0 0.0
    %1593 = vmatpush1.msra.mxu0 0.0
    %1594 = vmatprep.subr.mxu0 0.0
    %1595 = vmatpush1.msra.mxu0 0.0
    %1596 = vmatprep.mubr.f32.mxu0 0.0
    %1597 = vmatmul.mubr.f32.gmra.mrb[0].mxu0 %v1527
    %v1598 = vpop.f32.mrb[0].mxu0
    %v1599 = vadd.f32 %v1525, %v1598
    %v1600 = vpop.f32.mrb[0].mxu0
    %1601 = vmatprep.mubr.f32.mxu0 0.0
    %1602 = vmatmul.mubr.f32.gmra.mrb[0].mxu0 %v1530
    %v1603 = vpop.f32.mrb[0].mxu0
    %v1604 = vadd.f32 %v1525, %v1603
    %v1605 = vpop.f32.mrb[0].mxu0
    %1606 = vdwg.mxu0
    %v1607 = vmul.f32 %v1599, 0.5
    %v1608 = vmul.f32 %v1604, 0.5
    %v1609 = vmul.f32 %v1599, 0.70710677
    %v1610 = vmul.f32 %v1604, 0.70710677
    %v1611 = verf.f32.pop %v1609
    %v1612 = verf.f32.pop %v1610
    %v1613 = vadd.f32 %v1611, 1.0
    %v1614 = vadd.f32 %v1612, 1.0
    %v1615 = vmul.f32 %v1607, %v1613
    %v1616 = vmul.f32 %v1608, %v1614
    %v1617 = vld [vmem:[%s2 + $0x80] sm:$0xff]
    %v1618 = vld [vmem:[%s2 + $0x88] sm:$0xff]
    %v1619 = vld [vmem:[%s2 + $0x90] sm:$0xff]
    %v1620 = vld [vmem:[%s2 + $0x98] sm:$0xff]
    %v1621 = vld [vmem:[%s2 + $0xa0] sm:$0xff]
    %v1622 = vld [vmem:[%s2 + $0xa8] sm:$0xff]
    %v1623 = vld [vmem:[%s2 + $0xb0] sm:$0xff]
    %v1624 = vld [vmem:[%s2 + $0xb8] sm:$0xff]
    %v1625 = vlaneseq
    %v1626 = vshrl.u32 %v1625, 7
    %v1627 = vsub.s32 0, %v1626
    %v1628 = vrot.slane %v24, %v1627
    %vm1629 = vcmask 523264
    %v1631 = vsel %vm1629, %v1615, 0
    %v1634 = vsel %vm1629, %v1616, 0
    %1636 = vmatprep.subr.mxu0 0.0
    %1637 = vmatpush1.msra.mxu0 %v1617
    %1638 = vmatprep.subr.mxu0 0.0
    %1639 = vmatpush1.msra.mxu0 %v1618
    %1640 = vmatprep.subr.mxu0 0.0
    %1641 = vmatpush1.msra.mxu0 %v1619
    %1642 = vmatprep.subr.mxu0 0.0
    %1643 = vmatpush1.msra.mxu0 %v1620
    %1644 = vmatprep.subr.mxu0 0.0
    %1645 = vmatpush1.msra.mxu0 %v1621
    %1646 = vmatprep.subr.mxu0 0.0
    %1647 = vmatpush1.msra.mxu0 %v1622
    %1648 = vmatprep.subr.mxu0 0.0
    %1649 = vmatpush1.msra.mxu0 %v1623
    %1650 = vmatprep.subr.mxu0 0.0
    %1651 = vmatpush1.msra.mxu0 %v1624
    %1652 = vmatprep.subr.mxu0 0.0
    %1653 = vmatpush1.msra.mxu0 0.0
    %1654 = vmatprep.subr.mxu0 0.0
    %1655 = vmatpush1.msra.mxu0 0.0
    %1656 = vmatprep.subr.mxu0 0.0
    %1657 = vmatpush1.msra.mxu0 0.0
    %1658 = vmatprep.subr.mxu0 0.0
    %1659 = vmatpush1.msra.mxu0 0.0
    %1660 = vmatprep.subr.mxu0 0.0
    %1661 = vmatpush1.msra.mxu0 0.0
    %1662 = vmatprep.subr.mxu0 0.0
    %1663 = vmatpush1.msra.mxu0 0.0
    %1664 = vmatprep.subr.mxu0 0.0
    %1665 = vmatpush1.msra.mxu0 0.0
    %1666 = vmatprep.subr.mxu0 0.0
    %1667 = vmatpush1.msra.mxu0 0.0
    %1668 = vmatprep.subr.mxu0 0.0
    %1669 = vmatpush1.msra.mxu0 0.0
    %1670 = vmatprep.subr.mxu0 0.0
    %1671 = vmatpush1.msra.mxu0 0.0
    %1672 = vmatprep.subr.mxu0 0.0
    %1673 = vmatpush1.msra.mxu0 0.0
    %1674 = vmatprep.subr.mxu0 0.0
    %1675 = vmatpush1.msra.mxu0 0.0
    %1676 = vmatprep.subr.mxu0 0.0
    %1677 = vmatpush1.msra.mxu0 0.0
    %1678 = vmatprep.subr.mxu0 0.0
    %1679 = vmatpush1.msra.mxu0 0.0
    %1680 = vmatprep.subr.mxu0 0.0
    %1681 = vmatpush1.msra.mxu0 0.0
    %1682 = vmatprep.subr.mxu0 0.0
    %1683 = vmatpush1.msra.mxu0 0.0
    %1684 = vmatprep.subr.mxu0 0.0
    %1685 = vmatpush1.msra.mxu0 0.0
    %1686 = vmatprep.subr.mxu0 0.0
    %1687 = vmatpush1.msra.mxu0 0.0
    %1688 = vmatprep.subr.mxu0 0.0
    %1689 = vmatpush1.msra.mxu0 0.0
    %1690 = vmatprep.subr.mxu0 0.0
    %1691 = vmatpush1.msra.mxu0 0.0
    %1692 = vmatprep.subr.mxu0 0.0
    %1693 = vmatpush1.msra.mxu0 0.0
    %1694 = vmatprep.subr.mxu0 0.0
    %1695 = vmatpush1.msra.mxu0 0.0
    %1696 = vmatprep.subr.mxu0 0.0
    %1697 = vmatpush1.msra.mxu0 0.0
    %1698 = vmatprep.subr.mxu0 0.0
    %1699 = vmatpush1.msra.mxu0 0.0
    %1700 = vmatprep.mubr.f32.mxu0 0.0
    %1701 = vmatmul.mubr.f32.gmra.mrb[0].mxu0 %v1631
    %v1702 = vpop.f32.mrb[0].mxu0
    %v1703 = vadd.f32 %v1628, %v1702
    %v1704 = vpop.f32.mrb[0].mxu0
    %1705 = vmatprep.mubr.f32.mxu0 0.0
    %1706 = vmatmul.mubr.f32.gmra.mrb[0].mxu0 %v1634
    %v1707 = vpop.f32.mrb[0].mxu0
    %v1708 = vadd.f32 %v1628, %v1707
    %v1709 = vpop.f32.mrb[0].mxu0
    %1710 = vdwg.mxu0
    %v1711 = vadd.f32 %v1478, %v1703
    %v1712 = vadd.f32 %v1479, %v1708
    %v1713 = vlaneseq
    %v1714 = vshrl.u32 %v1713, 7
    %v1715 = vsub.s32 1, %v1714
    %v1716 = vrot.slane %v24, %v1715
    %v1717 = vmul.f32 %v1711, %v1716
    %v1718 = vmul.f32 %v1712, %v1716
    %v1719 = vsel %vm27, %v1717, 0.0
    %1720 = vadd.xlane.f32.xlu0 %v1719
    %v1721 = vpop.xlane.xlu0 %1720
    %v1722 = vsel %vm27, %v1718, 0.0
    %1723 = vadd.xlane.f32.xlu0 %v1722
    %v1724 = vpop.xlane.xlu0 %1723
    %v1725 = vlaneseq
    %v1726 = vshrl.u32 %v1725, 7
    %v1727 = vsub.s32 3, %v1726
    %v1728 = vrot.slane %v24, %v1727
    %v1729 = vadd.f32 %v1721, %v1728
    %v1730 = vadd.f32 %v1724, %v1728
    %v1731 = vxor.u32 %v1729, 2147483648
    %v1732 = vxor.u32 %v1730, 2147483648
    %v1733 = vmul.f32 %v1731, 1.442695
    %v1734 = vpow.pop %v1733
    %v1735 = vmul.f32 %v1732, 1.442695
    %v1736 = vpow.pop %v1735
    %v1737 = vadd.f32 %v1734, 1.0
    %v1738 = vadd.f32 %v1736, 1.0
    %v1739 = vrcp.pop %v1737
    %v1740 = vmul.f32 1.0, %v1739
    %v1741 = vrcp.pop %v1738
    %v1742 = vmul.f32 1.0, %v1741
    %v1743 = vld [vmem:[%s1] sm:$0xff]
    %v1744 = vld [vmem:[%s1 + $0x8] sm:$0xff]
    %v1745 = vsub.f32 1.0, %v1740
    %v1746 = vsub.f32 1.0, %v1742
    %1748 = vset.pattern.permute.xlu0 0
    %1749 = vperm.xlu0 %1748, %v1745
    %v1750 = vpop.permute.xlu0 %1749
    %1753 = vset.pattern.permute.xlu0 0
    %1754 = vperm.xlu0 %1753, %v1746
    %v1755 = vpop.permute.xlu0 %1754
    %v1757 = vmul.f32 %v1711, %v1750
    %v1758 = vmul.f32 %v1712, %v1755
    %1760 = vset.pattern.permute.xlu0 0
    %1761 = vperm.xlu0 %1760, %v1740
    %v1762 = vpop.permute.xlu0 %1761
    %1765 = vset.pattern.permute.xlu0 0
    %1766 = vperm.xlu0 %1765, %v1742
    %v1767 = vpop.permute.xlu0 %1766
    %v1769 = vmul.f32 %v1743, %v1762
    %v1770 = vmul.f32 %v1744, %v1767
    %v1771 = vadd.f32 %v1757, %v1769
    %v1772 = vadd.f32 %v1758, %v1770
    %1773 = vst.msk [vmem:[#allocation2] sm:$0xff] %vm27, %v1771
    %1774 = vst.msk [vmem:[#allocation2 + $0x8] sm:$0xff] %vm27, %v1772
    // Predicated region
    $region22: #{tpu_custom_call.1} parent=1 // pred_check
      _
    $region23: #{tpu_custom_call.1} parent=1 // pred_check_branch
      %1776 = sbr.rel (0) target = $region25
    $region24: #{tpu_custom_call.1} parent=1 // pred_region
      %s1778 = ssub.s32 256, 256
      %1779 = vsyncadd [#allocation3], %s1778
      %s1780 = sshll.u32 [#allocation2], 4
      %s1781 = int_to_ptr.vmem [resolvable:$true] %s1780
      %1786 = dma.vmem_to_hbm [thread:$0]  %s1781, 256, %s5, [#allocation3], 128, 128, 8
    $region25: #{tpu_custom_call.1} parent=1 // pred_fallthru
      _
    // Predicated region
    $region26: #{tpu_custom_call.1} parent=1 // pred_check
      _
    $region27: #{tpu_custom_call.1} parent=1 // pred_check_branch
      %1788 = sbr.rel (0) target = $region29
    $region28: #{tpu_custom_call.1} parent=1 // pred_region
      %1789 = dma.done [#allocation3], 256
    $region29: #{tpu_custom_call.1} parent=1 // pred_fallthru
      _
    %1790 = vsyncpa [#allocation3], 1

</llo_original>
